<compile_context>
chip_gen: v7x
topology: tpu7x:2x2x1
jax: 0.10.0
libtpu: 0.0.40
codegen_flags: <defaults>
</compile_context>

<pallas_src>
import jax
import jax.numpy as jnp
from jax import lax
from jax.experimental import pallas as pl
from jax.experimental.pallas import tpu as pltpu

EPS = 1e-5
LANE = 128     # lane-dense padding multiple for K and channel dims


# ---------------------------------------------------------------------------
# Small helpers
# ---------------------------------------------------------------------------
def _round_up(n, m):
    return (n + m - 1) // m * m


def _pad2d(a, rows, cols):
    r, c = a.shape
    return jnp.pad(a, ((0, rows - r), (0, cols - c)))


def _choose_div(n, cands):
    for c in cands:
        if n % c == 0:
            return c
    return n


def _tm_for(m):
    # Bigger M tiles -> fewer weight re-reads and per-step overheads; keep
    # padding waste bounded for tiny problems.
    return 512 if m >= 512 else 256


# ---------------------------------------------------------------------------
# Pass 1: tiled matmul (bf16 operands, f32 accumulation) + BN stat partials
# ---------------------------------------------------------------------------
def _matmul_stats_kernel(x_ref, w_ref, o_ref, sum_ref, ssq_ref, acc_ref):
    k = pl.program_id(1)

    @pl.when(k == 0)
    def _():
        acc_ref[...] = jnp.zeros_like(acc_ref)

    acc_ref[...] += jnp.dot(x_ref[...], w_ref[...],
                            preferred_element_type=jnp.float32)

    @pl.when(k == pl.num_programs(1) - 1)
    def _():
        acc = acc_ref[...]
        o_ref[...] = acc.astype(o_ref.dtype)
        row_sum = jnp.sum(acc, axis=0, keepdims=True)          # XLU reduce
        row_ssq = jnp.sum(acc * acc, axis=0, keepdims=True)
        # Broadcast into an (8, P) slab so the stats output stays (8,128)-tiled.
        sum_ref[...] = jnp.broadcast_to(row_sum, sum_ref.shape)
        ssq_ref[...] = jnp.broadcast_to(row_ssq, ssq_ref.shape)


def matmul_stats(patches, w_mat, tm):
    """(Mp,Kp)@(Kp,Pp) with f32 accumulation; raw conv output stored bf16.
    Also returns per-M-tile per-channel sum / sum-of-squares partials so the
    BatchNorm statistics stay global over the whole batch."""
    mp, kp = patches.shape
    pp = w_mat.shape[1]
    tk = _choose_div(kp, (512, 384, 256, 128))
    n_m, n_k = mp // tm, kp // tk

    flops = 2 * mp * kp * pp
    bytes_accessed = (patches.size * 2 + n_m * w_mat.size * 2
                      + mp * pp * 2 + 2 * n_m * 8 * pp * 4)

    conv, sums, ssqs = pl.pallas_call(
        _matmul_stats_kernel,
        grid=(n_m, n_k),
        in_specs=[
            pl.BlockSpec((tm, tk), lambda i, k: (i, k)),
            pl.BlockSpec((tk, pp), lambda i, k: (k, 0)),
        ],
        out_specs=[
            pl.BlockSpec((tm, pp), lambda i, k: (i, 0)),
            pl.BlockSpec((8, pp), lambda i, k: (i, 0)),
            pl.BlockSpec((8, pp), lambda i, k: (i, 0)),
        ],
        out_shape=[
            jax.ShapeDtypeStruct((mp, pp), jnp.bfloat16),
            jax.ShapeDtypeStruct((n_m * 8, pp), jnp.float32),
            jax.ShapeDtypeStruct((n_m * 8, pp), jnp.float32),
        ],
        scratch_shapes=[pltpu.VMEM((tm, pp), jnp.float32)],
        compiler_params=pltpu.CompilerParams(
            dimension_semantics=("parallel", "arbitrary")),
        cost_estimate=pl.CostEstimate(flops=flops, transcendentals=0,
                                      bytes_accessed=int(bytes_accessed)),
    )(patches, w_mat)
    return conv, sums[0::8], ssqs[0::8]


# ---------------------------------------------------------------------------
# Pass 2: tiled normalize (+ fused residual-BN / identity residual) + ReLU
# ---------------------------------------------------------------------------
def _norm_relu_kernel(c_ref, s_ref, b_ref, o_ref):
    y = c_ref[...] * s_ref[...] + b_ref[...]
    o_ref[...] = jnp.maximum(y, 0.0).astype(o_ref.dtype)


def _norm_id_res_relu_kernel(c_ref, s_ref, b_ref, r_ref, o_ref):
    y = c_ref[...] * s_ref[...] + b_ref[...] + r_ref[...].astype(jnp.float32)
    o_ref[...] = jnp.maximum(y, 0.0).astype(o_ref.dtype)


def _norm_proj_res_relu_kernel(c_ref, s_ref, b_ref, r_ref, rs_ref, rb_ref, o_ref):
    y = c_ref[...] * s_ref[...] + b_ref[...]
    y = y + r_ref[...] * rs_ref[...] + rb_ref[...]
    o_ref[...] = jnp.maximum(y, 0.0).astype(o_ref.dtype)


def bn_normalize(conv, scale, shift, *, residual=None, res_scale=None,
                 res_shift=None, out_dtype=jnp.float32):
    mp, pp = conv.shape
    tm = _choose_div(mp, (512, 256, 128))
    n_m = mp // tm
    row_spec = pl.BlockSpec((tm, pp), lambda i: (i, 0))
    vec_spec = pl.BlockSpec((1, pp), lambda i: (0, 0))

    if residual is None:
        kernel = _norm_relu_kernel
        args = (conv, scale, shift)
        in_specs = [row_spec, vec_spec, vec_spec]
    elif res_scale is None:                      # identity shortcut
        kernel = _norm_id_res_relu_kernel
        args = (conv, scale, shift, residual)
        in_specs = [row_spec, vec_spec, vec_spec, row_spec]
    else:                                        # projection shortcut (BN fused)
        kernel = _norm_proj_res_relu_kernel
        args = (conv, scale, shift, residual, res_scale, res_shift)
        in_specs = [row_spec, vec_spec, vec_spec, row_spec, vec_spec, vec_spec]

    out_itemsize = jnp.dtype(out_dtype).itemsize
    bytes_accessed = (sum(int(a.size) * a.dtype.itemsize for a in args)
                      + mp * pp * out_itemsize)

    return pl.pallas_call(
        kernel,
        grid=(n_m,),
        in_specs=in_specs,
        out_specs=row_spec,
        out_shape=jax.ShapeDtypeStruct((mp, pp), out_dtype),
        compiler_params=pltpu.CompilerParams(
            dimension_semantics=("parallel",)),
        cost_estimate=pl.CostEstimate(flops=4 * mp * pp, transcendentals=0,
                                      bytes_accessed=int(bytes_accessed)),
    )(*args)


# ---------------------------------------------------------------------------
# Glue: im2col / weight layout / BN statistic folding (plain JAX, tiny)
# ---------------------------------------------------------------------------
def im2col(x_nhwc, k, stride, padding):
    n, h, w, c = x_nhwc.shape
    xp = jnp.pad(x_nhwc, ((0, 0), (padding, padding), (padding, padding), (0, 0)))
    ho = (h + 2 * padding - k) // stride + 1
    wo = (w + 2 * padding - k) // stride + 1
    cols = []
    for dh in range(k):
        for dw in range(k):
            cols.append(xp[:, dh:dh + stride * ho:stride, dw:dw + stride * wo:stride, :])
    patches = jnp.concatenate(cols, axis=-1)            # (N, Ho, Wo, k*k*C)
    return patches.reshape(n * ho * wo, k * k * c), (n, ho, wo)


def _w_oihw_to_mat(w_pt):
    # (out, in, kh, kw) -> (kh*kw*in, out), matching im2col's (dh, dw, c) order.
    out = w_pt.shape[0]
    return jnp.transpose(w_pt, (2, 3, 1, 0)).reshape(-1, out)


def bn_scale_shift(sum_parts, ssq_parts, m_real, gamma, beta, pp):
    total = jnp.sum(sum_parts, axis=0)
    total_sq = jnp.sum(ssq_parts, axis=0)
    mean = total / m_real
    var = jnp.maximum(total_sq / m_real - mean * mean, 0.0)   # biased, one-pass
    g = jnp.pad(gamma.astype(jnp.float32), (0, pp - gamma.shape[0]))
    b = jnp.pad(beta.astype(jnp.float32), (0, pp - beta.shape[0]))
    scale = g * lax.rsqrt(var + EPS)
    shift = b - mean * scale
    return scale.reshape(1, pp), shift.reshape(1, pp)


def conv_bn_raw(patches, w_mat, gamma, beta):
    """Padded bf16 GEMM + global BN stats -> raw conv (Mp,Pp) bf16, scale, shift."""
    m, k = patches.shape
    p = w_mat.shape[1]
    tm = _tm_for(m)
    mp = _round_up(m, tm)
    kp = _round_up(k, LANE)
    pp = _round_up(p, LANE)
    x_pad = _pad2d(patches, mp, kp).astype(jnp.bfloat16)
    w_pad = _pad2d(w_mat, kp, pp).astype(jnp.bfloat16)
    conv, sums, ssqs = matmul_stats(x_pad, w_pad, tm)
    scale, shift = bn_scale_shift(sums, ssqs, m, gamma, beta, pp)
    return conv, scale, shift


# ---------------------------------------------------------------------------
# BasicBlock forward
# ---------------------------------------------------------------------------
def basic_block_forward(params, x_nchw, stride):
    x = jnp.transpose(x_nchw, (0, 2, 3, 1)).astype(jnp.float32)    # NHWC, f32
    x_bf = x.astype(jnp.bfloat16)                                   # GEMM operand
    n, h, w, cin = x.shape
    p = params["w1"].shape[0]
    pp = _round_up(p, LANE)

    # conv1 (3x3, stride) + bn1 + relu
    patches1, (_, ho, wo) = im2col(x_bf, 3, stride, 1)
    m = n * ho * wo
    mp = _round_up(m, _tm_for(m))
    c1, s1, b1 = conv_bn_raw(patches1, _w_oihw_to_mat(params["w1"]),
                             params["g1"], params["b1"])
    h1 = bn_normalize(c1, s1, b1, out_dtype=jnp.bfloat16)           # (mp, pp)
    h1 = h1[:m, :p].reshape(n, ho, wo, p)

    # shortcut: projection (1x1 conv + BN, normalization fused into the final
    # pass) or identity.  Raw (Mp,Pp) residual is consumed per-tile in pass 2.
    if stride != 1 or cin != p:
        xs = x_bf[:, ::stride, ::stride, :].reshape(m, cin)
        r_raw, r_scale, r_shift = conv_bn_raw(
            xs, _w_oihw_to_mat(params["ws"]), params["gs"], params["bs"])
    else:
        r_raw = _pad2d(x.reshape(m, cin), mp, pp)                   # identity, f32
        r_scale = r_shift = None

    # conv2 (3x3, stride 1) + bn2 + residual add + relu (fused epilogue)
    patches2, _ = im2col(h1, 3, 1, 1)
    c2, s2, b2 = conv_bn_raw(patches2, _w_oihw_to_mat(params["w2"]),
                             params["g2"], params["b2"])
    out = bn_normalize(c2, s2, b2, residual=r_raw, res_scale=r_scale,
                       res_shift=r_shift, out_dtype=jnp.float32)
    out = out[:m, :p].reshape(n, ho, wo, p)
    return jnp.transpose(out, (0, 3, 1, 2))                          # NCHW


# ---------------------------------------------------------------------------
# Pure-JAX reference (the PyTorch-module spec, f32 everywhere)
# ---------------------------------------------------------------------------
def _ref_forward(params, x_nchw, stride):
    x = jnp.transpose(x_nchw, (0, 2, 3, 1)).astype(jnp.float32)

    def conv(x, w_pt, s, pad):
        w = jnp.transpose(w_pt, (2, 3, 1, 0))  # HWIO
        return lax.conv_general_dilated(
            x, w, (s, s), [(pad, pad), (pad, pad)],
            dimension_numbers=("NHWC", "HWIO", "NHWC"))

    def bn(y, g, b):
        mean = jnp.mean(y, axis=(0, 1, 2), keepdims=True)
        var = jnp.mean(jnp.square(y - mean), axis=(0, 1, 2), keepdims=True)
        return (y - mean) * lax.rsqrt(var + EPS) * g + b

    cin = x.shape[-1]
    p = params["w1"].shape[0]
    h = jax.nn.relu(bn(conv(x, params["w1"], stride, 1), params["g1"], params["b1"]))
    h = bn(conv(h, params["w2"], 1, 1), params["g2"], params["b2"])
    if stride != 1 or cin != p:
        sc = bn(conv(x, params["ws"], stride, 0), params["gs"], params["bs"])
    else:
        sc = x
    out = jax.nn.relu(h + sc)
    return jnp.transpose(out, (0, 3, 1, 2))


# ---------------------------------------------------------------------------
# Deterministic parameter init (shapes follow the PyTorch module __init__)
# ---------------------------------------------------------------------------
def init_params(key, inplanes, planes, stride):
    ks = jax.random.split(key, 8)

    def conv_init(k, shape):
        fan_in = shape[1] * shape[2] * shape[3]
        return jax.random.normal(k, shape, jnp.float32) * (2.0 / fan_in) ** 0.5

    p = {
        "w1": conv_init(ks[0], (planes, inplanes, 3, 3)),
        "g1": 1.0 + 0.1 * jax.random.normal(ks[1], (planes,), jnp.float32),
        "b1": 0.1 * jax.random.normal(ks[2], (planes,), jnp.float32),
        "w2": conv_init(ks[3], (planes, planes, 3, 3)),
        "g2": 1.0 + 0.1 * jax.random.normal(ks[4], (planes,), jnp.float32),
        "b2": 0.1 * jax.random.normal(ks[5], (planes,), jnp.float32),
    }
    if stride != 1 or inplanes != planes:
        p["ws"] = conv_init(ks[6], (planes, inplanes, 1, 1))
        p["gs"] = 1.0 + 0.1 * jax.random.normal(ks[7], (planes,), jnp.float32),
        p["gs"] = p["gs"][0]
        p["bs"] = jnp.zeros((planes,), jnp.float32)
    return p


if __name__ == "__main__":
    key = jax.random.PRNGKey(0)
    k_x1, k_x2, k_p1, k_p2 = jax.random.split(key, 4)

    fwd = jax.jit(basic_block_forward, static_argnums=2)
    ref = jax.jit(_ref_forward, static_argnums=2)

    # Case 1: projection shortcut (stride=2, channel change)
    x1 = jax.random.normal(k_x1, (2, 4, 16, 16), jnp.float32)
    p1 = init_params(k_p1, inplanes=4, planes=8, stride=2)
    out1 = jax.block_until_ready(fwd(p1, x1, 2))
    ref1 = jax.block_until_ready(ref(p1, x1, 2))
    assert out1.shape == (2, 8, 8, 8)
    err1 = float(jnp.max(jnp.abs(out1 - ref1)))
    assert jnp.allclose(out1, ref1, rtol=3e-2, atol=3e-2), err1

    # Case 2: identity shortcut (stride=1, inplanes == planes)
    x2 = jax.random.normal(k_x2, (2, 8, 16, 16), jnp.float32)
    p2 = init_params(k_p2, inplanes=8, planes=8, stride=1)
    out2 = jax.block_until_ready(fwd(p2, x2, 1))
    ref2 = jax.block_until_ready(ref(p2, x2, 1))
    assert out2.shape == (2, 8, 16, 16)
    err2 = float(jnp.max(jnp.abs(out2 - ref2)))
    assert jnp.allclose(out2, ref2, rtol=3e-2, atol=3e-2), err2

    print("KERNEL_OK")
</pallas_src>

<mosaic_0001>
module attributes {stable_mosaic.version = 11 : i64} {
  func.func @_norm_relu_kernel(%arg0: i32, %arg1: memref<256x128xbf16, #tpu.memory_space<vmem>>, %arg2: memref<1x128xf32, #tpu.memory_space<vmem>>, %arg3: memref<1x128xf32, #tpu.memory_space<vmem>>, %arg4: memref<256x128xbf16, #tpu.memory_space<vmem>>) attributes {dimension_semantics = [#tpu.dimension_semantics<parallel>], iteration_bounds = array<i64: 1>, scalar_prefetch = 0 : i64, scratch_operands = 0 : i64, tpu.core_type = #tpu.core_type<tc>, window_params = [{transform_indices = @transform_0, window_bounds = array<i64: 256, 128>}, {pipeline_mode = #tpu.pipeline_mode<synchronous>, transform_indices = @transform_1, window_bounds = array<i64: 1, 128>}, {pipeline_mode = #tpu.pipeline_mode<synchronous>, transform_indices = @transform_2, window_bounds = array<i64: 1, 128>}, {transform_indices = @transform_3, window_bounds = array<i64: 256, 128>}]} {
    %c0 = arith.constant 0 : index
    %c0_0 = arith.constant 0 : index
    %0 = vector.load %arg1[%c0, %c0_0] : memref<256x128xbf16, #tpu.memory_space<vmem>>, vector<256x128xbf16>
    %c0_1 = arith.constant 0 : index
    %c0_2 = arith.constant 0 : index
    %1 = vector.load %arg2[%c0_1, %c0_2] : memref<1x128xf32, #tpu.memory_space<vmem>>, vector<1x128xf32>
    %2 = arith.extf %0 : vector<256x128xbf16> to vector<256x128xf32>
    %3 = vector.broadcast %1 : vector<1x128xf32> to vector<256x128xf32>
    %4 = arith.mulf %2, %3 : vector<256x128xf32>
    %c0_3 = arith.constant 0 : index
    %c0_4 = arith.constant 0 : index
    %5 = vector.load %arg3[%c0_3, %c0_4] : memref<1x128xf32, #tpu.memory_space<vmem>>, vector<1x128xf32>
    %6 = vector.broadcast %5 : vector<1x128xf32> to vector<256x128xf32>
    %7 = arith.addf %4, %6 : vector<256x128xf32>
    %cst = arith.constant 0.000000e+00 : f32
    %8 = vector.broadcast %cst : f32 to vector<256x128xf32>
    %9 = arith.maximumf %7, %8 : vector<256x128xf32>
    %10 = arith.truncf %9 : vector<256x128xf32> to vector<256x128xbf16>
    %c0_5 = arith.constant 0 : index
    %c0_6 = arith.constant 0 : index
    %11 = vector.load %arg4[%c0_5, %c0_6] : memref<256x128xbf16, #tpu.memory_space<vmem>>, vector<256x128xbf16>
    tpu.vector_store %arg4[%c0_5, %c0_6], %10 {strides = array<i32>} : memref<256x128xbf16, #tpu.memory_space<vmem>>, vector<256x128xbf16>,
    return
  }
  func.func @transform_0(%arg0: i32) -> (i32, i32) {
    %c0_i32 = arith.constant 0 : i32
    %c0_i32_0 = arith.constant 0 : i32
    return %arg0, %c0_i32 : i32, i32
  }
  func.func @transform_1(%arg0: i32) -> (i32, i32) {
    %c0_i32 = arith.constant 0 : i32
    %c0_i32_0 = arith.constant 0 : i32
    %c0_i32_1 = arith.constant 0 : i32
    return %c0_i32, %c0_i32_0 : i32, i32
  }
  func.func @transform_2(%arg0: i32) -> (i32, i32) {
    %c0_i32 = arith.constant 0 : i32
    %c0_i32_0 = arith.constant 0 : i32
    %c0_i32_1 = arith.constant 0 : i32
    return %c0_i32, %c0_i32_0 : i32, i32
  }
  func.func @transform_3(%arg0: i32) -> (i32, i32) {
    %c0_i32 = arith.constant 0 : i32
    %c0_i32_0 = arith.constant 0 : i32
    return %arg0, %c0_i32 : i32, i32
  }
}

module attributes {stable_mosaic.version = 11 : i64} {
  func.func @_matmul_stats_kernel(%arg0: i32, %arg1: i32, %arg2: memref<256x128xbf16, #tpu.memory_space<vmem>>, %arg3: memref<128x128xbf16, #tpu.memory_space<vmem>>, %arg4: memref<256x128xbf16, #tpu.memory_space<vmem>>, %arg5: memref<8x128xf32, #tpu.memory_space<vmem>>, %arg6: memref<8x128xf32, #tpu.memory_space<vmem>>, %arg7: memref<256x128xf32, #tpu.memory_space<vmem>>) attributes {dimension_semantics = [#tpu.dimension_semantics<parallel>, #tpu.dimension_semantics<arbitrary>], iteration_bounds = array<i64: 1, 1>, scalar_prefetch = 0 : i64, scratch_operands = 1 : i64, tpu.core_type = #tpu.core_type<tc>, window_params = [{transform_indices = @transform_0, window_bounds = array<i64: 256, 128>}, {transform_indices = @transform_1, window_bounds = array<i64: 128, 128>}, {transform_indices = @transform_2, window_bounds = array<i64: 256, 128>}, {transform_indices = @transform_3, window_bounds = array<i64: 8, 128>}, {transform_indices = @transform_4, window_bounds = array<i64: 8, 128>}]} {
    %c0_i32 = arith.constant 0 : i32
    %0 = arith.cmpi eq, %arg1, %c0_i32 : i32
    %1 = arith.extui %0 : i1 to i32
    %c0_i32_0 = arith.constant 0 : i32
    %2 = arith.cmpi ne, %1, %c0_i32_0 : i32
    scf.if %2 {
      %cst_10 = arith.constant 0.000000e+00 : f32
      %12 = vector.broadcast %cst_10 : f32 to vector<256x128xf32>
      %c0_11 = arith.constant 0 : index
      %c0_12 = arith.constant 0 : index
      %13 = vector.load %arg7[%c0_11, %c0_12] : memref<256x128xf32, #tpu.memory_space<vmem>>, vector<256x128xf32>
      tpu.vector_store %arg7[%c0_11, %c0_12], %12 {strides = array<i32>} : memref<256x128xf32, #tpu.memory_space<vmem>>, vector<256x128xf32>,
    } else {
    }
    %c0 = arith.constant 0 : index
    %c0_1 = arith.constant 0 : index
    %3 = vector.load %arg7[%c0, %c0_1] : memref<256x128xf32, #tpu.memory_space<vmem>>, vector<256x128xf32>
    %c0_2 = arith.constant 0 : index
    %c0_3 = arith.constant 0 : index
    %4 = vector.load %arg2[%c0_2, %c0_3] : memref<256x128xbf16, #tpu.memory_space<vmem>>, vector<256x128xbf16>
    %c0_4 = arith.constant 0 : index
    %c0_5 = arith.constant 0 : index
    %5 = vector.load %arg3[%c0_4, %c0_5] : memref<128x128xbf16, #tpu.memory_space<vmem>>, vector<128x128xbf16>
    %cst = arith.constant dense<0.000000e+00> : vector<256x128xf32>
    %6 = tpu.matmul %4, %5, %cst {dimension_numbers = #tpu.dot_dimension_numbers<[1], [0], [0], [1], [0, 0, 1, 1], [], []>} : vector<256x128xbf16>, vector<128x128xbf16>, vector<256x128xf32> -> vector<256x128xf32>
    %7 = arith.addf %3, %6 : vector<256x128xf32>
    %c0_6 = arith.constant 0 : index
    %c0_7 = arith.constant 0 : index
    %8 = vector.load %arg7[%c0_6, %c0_7] : memref<256x128xf32, #tpu.memory_space<vmem>>, vector<256x128xf32>
    tpu.vector_store %arg7[%c0_6, %c0_7], %7 {strides = array<i32>} : memref<256x128xf32, #tpu.memory_space<vmem>>, vector<256x128xf32>,
    %c0_i32_8 = arith.constant 0 : i32
    %9 = arith.cmpi eq, %arg1, %c0_i32_8 : i32
    %10 = arith.extui %9 : i1 to i32
    %c0_i32_9 = arith.constant 0 : i32
    %11 = arith.cmpi ne, %10, %c0_i32_9 : i32
    scf.if %11 {
      %c0_10 = arith.constant 0 : index
      %c0_11 = arith.constant 0 : index
      %12 = vector.load %arg7[%c0_10, %c0_11] : memref<256x128xf32, #tpu.memory_space<vmem>>, vector<256x128xf32>
      %13 = arith.truncf %12 : vector<256x128xf32> to vector<256x128xbf16>
      %c0_12 = arith.constant 0 : index
      %c0_13 = arith.constant 0 : index
      %14 = vector.load %arg4[%c0_12, %c0_13] : memref<256x128xbf16, #tpu.memory_space<vmem>>, vector<256x128xbf16>
      tpu.vector_store %arg4[%c0_12, %c0_13], %13 {strides = array<i32>} : memref<256x128xbf16, #tpu.memory_space<vmem>>, vector<256x128xbf16>,
      %cst_14 = arith.constant dense<0.000000e+00> : vector<128xf32>
      %15 = vector.multi_reduction <add>, %12, %cst_14 [0] : vector<256x128xf32> to vector<128xf32>
      %16 = vector.shape_cast %15 : vector<128xf32> to vector<1x128xf32>
      %17 = arith.mulf %12, %12 : vector<256x128xf32>
      %cst_15 = arith.constant dense<0.000000e+00> : vector<128xf32>
      %18 = vector.multi_reduction <add>, %17, %cst_15 [0] : vector<256x128xf32> to vector<128xf32>
      %19 = vector.shape_cast %18 : vector<128xf32> to vector<1x128xf32>
      %20 = vector.shape_cast %16 : vector<1x128xf32> to vector<1x128xf32>
      %21 = vector.broadcast %20 : vector<1x128xf32> to vector<8x128xf32>
      %c0_16 = arith.constant 0 : index
      %c0_17 = arith.constant 0 : index
      %22 = vector.load %arg5[%c0_16, %c0_17] : memref<8x128xf32, #tpu.memory_space<vmem>>, vector<8x128xf32>
      tpu.vector_store %arg5[%c0_16, %c0_17], %21 {strides = array<i32>} : memref<8x128xf32, #tpu.memory_space<vmem>>, vector<8x128xf32>,
      %23 = vector.shape_cast %19 : vector<1x128xf32> to vector<1x128xf32>
      %24 = vector.broadcast %23 : vector<1x128xf32> to vector<8x128xf32>
      %c0_18 = arith.constant 0 : index
      %c0_19 = arith.constant 0 : index
      %25 = vector.load %arg6[%c0_18, %c0_19] : memref<8x128xf32, #tpu.memory_space<vmem>>, vector<8x128xf32>
      tpu.vector_store %arg6[%c0_18, %c0_19], %24 {strides = array<i32>} : memref<8x128xf32, #tpu.memory_space<vmem>>, vector<8x128xf32>,
    } else {
    }
    return
  }
  func.func @transform_0(%arg0: i32, %arg1: i32) -> (i32, i32) {
    %c0_i32 = arith.constant 0 : i32
    return %arg0, %arg1 : i32, i32
  }
  func.func @transform_1(%arg0: i32, %arg1: i32) -> (i32, i32) {
    %c0_i32 = arith.constant 0 : i32
    %c0_i32_0 = arith.constant 0 : i32
    return %arg1, %c0_i32 : i32, i32
  }
  func.func @transform_2(%arg0: i32, %arg1: i32) -> (i32, i32) {
    %c0_i32 = arith.constant 0 : i32
    %c0_i32_0 = arith.constant 0 : i32
    return %arg0, %c0_i32 : i32, i32
  }
  func.func @transform_3(%arg0: i32, %arg1: i32) -> (i32, i32) {
    %c0_i32 = arith.constant 0 : i32
    %c0_i32_0 = arith.constant 0 : i32
    return %arg0, %c0_i32 : i32, i32
  }
  func.func @transform_4(%arg0: i32, %arg1: i32) -> (i32, i32) {
    %c0_i32 = arith.constant 0 : i32
    %c0_i32_0 = arith.constant 0 : i32
    return %arg0, %c0_i32 : i32, i32
  }
}

module attributes {stable_mosaic.version = 11 : i64} {
  func.func @_norm_proj_res_relu_kernel(%arg0: i32, %arg1: memref<256x128xbf16, #tpu.memory_space<vmem>>, %arg2: memref<1x128xf32, #tpu.memory_space<vmem>>, %arg3: memref<1x128xf32, #tpu.memory_space<vmem>>, %arg4: memref<256x128xbf16, #tpu.memory_space<vmem>>, %arg5: memref<1x128xf32, #tpu.memory_space<vmem>>, %arg6: memref<1x128xf32, #tpu.memory_space<vmem>>, %arg7: memref<256x128xf32, #tpu.memory_space<vmem>>) attributes {dimension_semantics = [#tpu.dimension_semantics<parallel>], iteration_bounds = array<i64: 1>, scalar_prefetch = 0 : i64, scratch_operands = 0 : i64, tpu.core_type = #tpu.core_type<tc>, window_params = [{transform_indices = @transform_0, window_bounds = array<i64: 256, 128>}, {pipeline_mode = #tpu.pipeline_mode<synchronous>, transform_indices = @transform_1, window_bounds = array<i64: 1, 128>}, {pipeline_mode = #tpu.pipeline_mode<synchronous>, transform_indices = @transform_2, window_bounds = array<i64: 1, 128>}, {transform_indices = @transform_3, window_bounds = array<i64: 256, 128>}, {pipeline_mode = #tpu.pipeline_mode<synchronous>, transform_indices = @transform_4, window_bounds = array<i64: 1, 128>}, {pipeline_mode = #tpu.pipeline_mode<synchronous>, transform_indices = @transform_5, window_bounds = array<i64: 1, 128>}, {transform_indices = @transform_6, window_bounds = array<i64: 256, 128>}]} {
    %c0 = arith.constant 0 : index
    %c0_0 = arith.constant 0 : index
    %0 = vector.load %arg1[%c0, %c0_0] : memref<256x128xbf16, #tpu.memory_space<vmem>>, vector<256x128xbf16>
    %c0_1 = arith.constant 0 : index
    %c0_2 = arith.constant 0 : index
    %1 = vector.load %arg2[%c0_1, %c0_2] : memref<1x128xf32, #tpu.memory_space<vmem>>, vector<1x128xf32>
    %2 = arith.extf %0 : vector<256x128xbf16> to vector<256x128xf32>
    %3 = vector.broadcast %1 : vector<1x128xf32> to vector<256x128xf32>
    %4 = arith.mulf %2, %3 : vector<256x128xf32>
    %c0_3 = arith.constant 0 : index
    %c0_4 = arith.constant 0 : index
    %5 = vector.load %arg3[%c0_3, %c0_4] : memref<1x128xf32, #tpu.memory_space<vmem>>, vector<1x128xf32>
    %6 = vector.broadcast %5 : vector<1x128xf32> to vector<256x128xf32>
    %7 = arith.addf %4, %6 : vector<256x128xf32>
    %c0_5 = arith.constant 0 : index
    %c0_6 = arith.constant 0 : index
    %8 = vector.load %arg4[%c0_5, %c0_6] : memref<256x128xbf16, #tpu.memory_space<vmem>>, vector<256x128xbf16>
    %c0_7 = arith.constant 0 : index
    %c0_8 = arith.constant 0 : index
    %9 = vector.load %arg5[%c0_7, %c0_8] : memref<1x128xf32, #tpu.memory_space<vmem>>, vector<1x128xf32>
    %10 = arith.extf %8 : vector<256x128xbf16> to vector<256x128xf32>
    %11 = vector.broadcast %9 : vector<1x128xf32> to vector<256x128xf32>
    %12 = arith.mulf %10, %11 : vector<256x128xf32>
    %13 = arith.addf %7, %12 : vector<256x128xf32>
    %c0_9 = arith.constant 0 : index
    %c0_10 = arith.constant 0 : index
    %14 = vector.load %arg6[%c0_9, %c0_10] : memref<1x128xf32, #tpu.memory_space<vmem>>, vector<1x128xf32>
    %15 = vector.broadcast %14 : vector<1x128xf32> to vector<256x128xf32>
    %16 = arith.addf %13, %15 : vector<256x128xf32>
    %cst = arith.constant 0.000000e+00 : f32
    %17 = vector.broadcast %cst : f32 to vector<256x128xf32>
    %18 = arith.maximumf %16, %17 : vector<256x128xf32>
    %c0_11 = arith.constant 0 : index
    %c0_12 = arith.constant 0 : index
    %19 = vector.load %arg7[%c0_11, %c0_12] : memref<256x128xf32, #tpu.memory_space<vmem>>, vector<256x128xf32>
    tpu.vector_store %arg7[%c0_11, %c0_12], %18 {strides = array<i32>} : memref<256x128xf32, #tpu.memory_space<vmem>>, vector<256x128xf32>,
    return
  }
  func.func @transform_0(%arg0: i32) -> (i32, i32) {
    %c0_i32 = arith.constant 0 : i32
    %c0_i32_0 = arith.constant 0 : i32
    return %arg0, %c0_i32 : i32, i32
  }
  func.func @transform_1(%arg0: i32) -> (i32, i32) {
    %c0_i32 = arith.constant 0 : i32
    %c0_i32_0 = arith.constant 0 : i32
    %c0_i32_1 = arith.constant 0 : i32
    return %c0_i32, %c0_i32_0 : i32, i32
  }
  func.func @transform_2(%arg0: i32) -> (i32, i32) {
    %c0_i32 = arith.constant 0 : i32
    %c0_i32_0 = arith.constant 0 : i32
    %c0_i32_1 = arith.constant 0 : i32
    return %c0_i32, %c0_i32_0 : i32, i32
  }
  func.func @transform_3(%arg0: i32) -> (i32, i32) {
    %c0_i32 = arith.constant 0 : i32
    %c0_i32_0 = arith.constant 0 : i32
    return %arg0, %c0_i32 : i32, i32
  }
  func.func @transform_4(%arg0: i32) -> (i32, i32) {
    %c0_i32 = arith.constant 0 : i32
    %c0_i32_0 = arith.constant 0 : i32
    %c0_i32_1 = arith.constant 0 : i32
    return %c0_i32, %c0_i32_0 : i32, i32
  }
  func.func @transform_5(%arg0: i32) -> (i32, i32) {
    %c0_i32 = arith.constant 0 : i32
    %c0_i32_0 = arith.constant 0 : i32
    %c0_i32_1 = arith.constant 0 : i32
    return %c0_i32, %c0_i32_0 : i32, i32
  }
  func.func @transform_6(%arg0: i32) -> (i32, i32) {
    %c0_i32 = arith.constant 0 : i32
    %c0_i32_0 = arith.constant 0 : i32
    return %arg0, %c0_i32 : i32, i32
  }
}

</mosaic_0001>

<llo_original>
// kernel: basic_block_forward.6
$region0: #{basic_block_forward.6}
  #allocation0 [shape = 'u32[]', space=smem, size = 0x4, offset = 0x4, fixed_abs, tag = 'smem constant byte address 0x4 - core index']
  #allocation1 [shape = 'u32[144,128]{1,0:T(1,128)}', space=vmem, size = 0x12000, scoped, tag = 'internal scratch']
  %s0 = inlined_call_operand.vmem [shape: bf16[256,128], index: 0, kind: input, shape index: {}]
  %s1 = inlined_call_operand.vmem [shape: f32[1,128], index: 1, kind: input, shape index: {}]
  %s2 = inlined_call_operand.vmem [shape: f32[1,128], index: 2, kind: input, shape index: {}]
  %s3 = inlined_call_operand.vmem [shape: bf16[256,128], index: 3, kind: output, shape index: {}]
  %s4 = sld [smem:[#allocation0]]
  $region22: #{basic_block_forward.6} parent=0
    _
  %s6 = ssub.s32 1, %s4
  %s7 = scalar_select 0, %s6, %s4
  // Predicated region
  $region2: #{basic_block_forward.6} parent=0 // pred_check
    _
  $region3: #{basic_block_forward.6} parent=0 // pred_check_branch
    %9 = sbr.rel (0) target = $region5
  $region4: #{basic_block_forward.6} parent=0 // pred_region
    _
  $region5: #{basic_block_forward.6} parent=0 // pred_fallthru
    _
  // Predicated region
  $region6: #{basic_block_forward.6} parent=0 // pred_check
    _
  $region7: #{basic_block_forward.6} parent=0 // pred_check_branch
    %11 = sbr.rel (0) target = $region9
  $region8: #{basic_block_forward.6} parent=0 // pred_region
    _
  $region9: #{basic_block_forward.6} parent=0 // pred_fallthru
    _
  // Predicated region
  $region10: #{basic_block_forward.6} parent=0 // pred_check
    _
  $region11: #{basic_block_forward.6} parent=0 // pred_check_branch
    %13 = sbr.rel (0) target = $region13
  $region12: #{basic_block_forward.6} parent=0 // pred_region
    _
  $region13: #{basic_block_forward.6} parent=0 // pred_fallthru
    _
  %v14 = vld [vmem:[%s0] sm:$0xf]
  %v15 = vld [vmem:[%s0 + $0x4] sm:$0xf]
  %v16 = vld [vmem:[%s0 + $0x8] sm:$0xf]
  %v17 = vld [vmem:[%s0 + $0xc] sm:$0xf]
  %v18 = vld [vmem:[%s0 + $0x10] sm:$0xf]
  %v19 = vld [vmem:[%s0 + $0x14] sm:$0xf]
  %v20 = vld [vmem:[%s0 + $0x18] sm:$0xf]
  %v21 = vld [vmem:[%s0 + $0x1c] sm:$0xf]
  %v22 = vld [vmem:[%s0 + $0x20] sm:$0xf]
  %v23 = vld [vmem:[%s0 + $0x24] sm:$0xf]
  %v24 = vld [vmem:[%s0 + $0x28] sm:$0xf]
  %v25 = vld [vmem:[%s0 + $0x2c] sm:$0xf]
  %v26 = vld [vmem:[%s0 + $0x30] sm:$0xf]
  %v27 = vld [vmem:[%s0 + $0x34] sm:$0xf]
  %v28 = vld [vmem:[%s0 + $0x38] sm:$0xf]
  %v29 = vld [vmem:[%s0 + $0x3c] sm:$0xf]
  %v30 = vld [vmem:[%s0 + $0x40] sm:$0xf]
  %v31 = vld [vmem:[%s0 + $0x44] sm:$0xf]
  %v32 = vld [vmem:[%s0 + $0x48] sm:$0xf]
  %v33 = vld [vmem:[%s0 + $0x4c] sm:$0xf]
  %v34 = vld [vmem:[%s0 + $0x50] sm:$0xf]
  %v35 = vld [vmem:[%s0 + $0x54] sm:$0xf]
  %v36 = vld [vmem:[%s0 + $0x58] sm:$0xf]
  %v37 = vld [vmem:[%s0 + $0x5c] sm:$0xf]
  %v38 = vld [vmem:[%s0 + $0x60] sm:$0xf]
  %v39 = vld [vmem:[%s0 + $0x64] sm:$0xf]
  %v40 = vld [vmem:[%s0 + $0x68] sm:$0xf]
  %v41 = vld [vmem:[%s0 + $0x6c] sm:$0xf]
  %v42 = vld [vmem:[%s0 + $0x70] sm:$0xf]
  %v43 = vld [vmem:[%s0 + $0x74] sm:$0xf]
  %v44 = vld [vmem:[%s0 + $0x78] sm:$0xf]
  %v45 = vld [vmem:[%s0 + $0x7c] sm:$0xf]
  %v46 = vld [vmem:[%s1] sm:$0x1]
  %v47 = vunpack.c.l.bf16 %v14
  %v48 = vunpack.c.l.bf16 %v15
  %v49 = vunpack.c.l.bf16 %v16
  %v50 = vunpack.c.l.bf16 %v17
  %v51 = vunpack.c.l.bf16 %v18
  %v52 = vunpack.c.l.bf16 %v19
  %v53 = vunpack.c.l.bf16 %v20
  %v54 = vunpack.c.l.bf16 %v21
  %v55 = vunpack.c.l.bf16 %v22
  %v56 = vunpack.c.l.bf16 %v23
  %v57 = vunpack.c.l.bf16 %v24
  %v58 = vunpack.c.l.bf16 %v25
  %v59 = vunpack.c.l.bf16 %v26
  %v60 = vunpack.c.l.bf16 %v27
  %v61 = vunpack.c.l.bf16 %v28
  %v62 = vunpack.c.l.bf16 %v29
  %v63 = vunpack.c.l.bf16 %v30
  %v64 = vunpack.c.l.bf16 %v31
  %v65 = vunpack.c.l.bf16 %v32
  %v66 = vunpack.c.l.bf16 %v33
  %v67 = vunpack.c.l.bf16 %v34
  %v68 = vunpack.c.l.bf16 %v35
  %v69 = vunpack.c.l.bf16 %v36
  %v70 = vunpack.c.l.bf16 %v37
  %v71 = vunpack.c.l.bf16 %v38
  %v72 = vunpack.c.l.bf16 %v39
  %v73 = vunpack.c.l.bf16 %v40
  %v74 = vunpack.c.l.bf16 %v41
  %v75 = vunpack.c.l.bf16 %v42
  %v76 = vunpack.c.l.bf16 %v43
  %v77 = vunpack.c.l.bf16 %v44
  %v78 = vunpack.c.l.bf16 %v45
  %v80 = vlaneseq
  %v81 = vshrl.u32 %v80, 7
  %v82 = vsub.s32 0, %v81
  %v83 = vrot.slane %v46, %v82
  %v85 = vmul.f32 %v47, %v83
  %v86 = vmul.f32 %v48, %v83
  %v87 = vmul.f32 %v49, %v83
  %v88 = vmul.f32 %v50, %v83
  %v89 = vmul.f32 %v51, %v83
  %v90 = vmul.f32 %v52, %v83
  %v91 = vmul.f32 %v53, %v83
  %v92 = vmul.f32 %v54, %v83
  %v93 = vmul.f32 %v55, %v83
  %v94 = vmul.f32 %v56, %v83
  %v95 = vmul.f32 %v57, %v83
  %v96 = vmul.f32 %v58, %v83
  %v97 = vmul.f32 %v59, %v83
  %v98 = vmul.f32 %v60, %v83
  %v99 = vmul.f32 %v61, %v83
  %v100 = vmul.f32 %v62, %v83
  %v101 = vmul.f32 %v63, %v83
  %v102 = vmul.f32 %v64, %v83
  %v103 = vmul.f32 %v65, %v83
  %v104 = vmul.f32 %v66, %v83
  %v105 = vmul.f32 %v67, %v83
  %v106 = vmul.f32 %v68, %v83
  %v107 = vmul.f32 %v69, %v83
  %v108 = vmul.f32 %v70, %v83
  %v109 = vmul.f32 %v71, %v83
  %v110 = vmul.f32 %v72, %v83
  %v111 = vmul.f32 %v73, %v83
  %v112 = vmul.f32 %v74, %v83
  %v113 = vmul.f32 %v75, %v83
  %v114 = vmul.f32 %v76, %v83
  %v115 = vmul.f32 %v77, %v83
  %v116 = vmul.f32 %v78, %v83
  %v117 = vld [vmem:[%s2] sm:$0x1]
  %v119 = vlaneseq
  %v120 = vshrl.u32 %v119, 7
  %v121 = vsub.s32 0, %v120
  %v122 = vrot.slane %v117, %v121
  %v124 = vadd.f32 %v85, %v122
  %v125 = vadd.f32 %v86, %v122
  %v126 = vadd.f32 %v87, %v122
  %v127 = vadd.f32 %v88, %v122
  %v128 = vadd.f32 %v89, %v122
  %v129 = vadd.f32 %v90, %v122
  %v130 = vadd.f32 %v91, %v122
  %v131 = vadd.f32 %v92, %v122
  %v132 = vadd.f32 %v93, %v122
  %v133 = vadd.f32 %v94, %v122
  %v134 = vadd.f32 %v95, %v122
  %v135 = vadd.f32 %v96, %v122
  %v136 = vadd.f32 %v97, %v122
  %v137 = vadd.f32 %v98, %v122
  %v138 = vadd.f32 %v99, %v122
  %v139 = vadd.f32 %v100, %v122
  %v140 = vadd.f32 %v101, %v122
  %v141 = vadd.f32 %v102, %v122
  %v142 = vadd.f32 %v103, %v122
  %v143 = vadd.f32 %v104, %v122
  %v144 = vadd.f32 %v105, %v122
  %v145 = vadd.f32 %v106, %v122
  %v146 = vadd.f32 %v107, %v122
  %v147 = vadd.f32 %v108, %v122
  %v148 = vadd.f32 %v109, %v122
  %v149 = vadd.f32 %v110, %v122
  %v150 = vadd.f32 %v111, %v122
  %v151 = vadd.f32 %v112, %v122
  %v152 = vadd.f32 %v113, %v122
  %v153 = vadd.f32 %v114, %v122
  %v154 = vadd.f32 %v115, %v122
  %v155 = vadd.f32 %v116, %v122
  %v156 = vmax.f32 %v124, 0.0
  %v157 = vmax.f32 %v125, 0.0
  %v158 = vmax.f32 %v126, 0.0
  %v159 = vmax.f32 %v127, 0.0
  %v160 = vmax.f32 %v128, 0.0
  %v161 = vmax.f32 %v129, 0.0
  %v162 = vmax.f32 %v130, 0.0
  %v163 = vmax.f32 %v131, 0.0
  %v164 = vmax.f32 %v132, 0.0
  %v165 = vmax.f32 %v133, 0.0
  %v166 = vmax.f32 %v134, 0.0
  %v167 = vmax.f32 %v135, 0.0
  %v168 = vmax.f32 %v136, 0.0
  %v169 = vmax.f32 %v137, 0.0
  %v170 = vmax.f32 %v138, 0.0
  %v171 = vmax.f32 %v139, 0.0
  %v172 = vmax.f32 %v140, 0.0
  %v173 = vmax.f32 %v141, 0.0
  %v174 = vmax.f32 %v142, 0.0
  %v175 = vmax.f32 %v143, 0.0
  %v176 = vmax.f32 %v144, 0.0
  %v177 = vmax.f32 %v145, 0.0
  %v178 = vmax.f32 %v146, 0.0
  %v179 = vmax.f32 %v147, 0.0
  %v180 = vmax.f32 %v148, 0.0
  %v181 = vmax.f32 %v149, 0.0
  %v182 = vmax.f32 %v150, 0.0
  %v183 = vmax.f32 %v151, 0.0
  %v184 = vmax.f32 %v152, 0.0
  %v185 = vmax.f32 %v153, 0.0
  %v186 = vmax.f32 %v154, 0.0
  %v187 = vmax.f32 %v155, 0.0
  %v188 = vpack.c.bf16 %v157, %v156
  %v189 = vpack.c.bf16 %v159, %v158
  %v190 = vpack.c.bf16 %v161, %v160
  %v191 = vpack.c.bf16 %v163, %v162
  %v192 = vpack.c.bf16 %v165, %v164
  %v193 = vpack.c.bf16 %v167, %v166
  %v194 = vpack.c.bf16 %v169, %v168
  %v195 = vpack.c.bf16 %v171, %v170
  %v196 = vpack.c.bf16 %v173, %v172
  %v197 = vpack.c.bf16 %v175, %v174
  %v198 = vpack.c.bf16 %v177, %v176
  %v199 = vpack.c.bf16 %v179, %v178
  %v200 = vpack.c.bf16 %v181, %v180
  %v201 = vpack.c.bf16 %v183, %v182
  %v202 = vpack.c.bf16 %v185, %v184
  %v203 = vpack.c.bf16 %v187, %v186
  %v220 = vunpack.c.l.b16 %v188
  %v221 = vunpack.c.h.b16 %v188
  %v222 = vunpack.c.l.b16 %v189
  %v223 = vunpack.c.h.b16 %v189
  %v224 = vunpack.c.l.b16 %v190
  %v225 = vunpack.c.h.b16 %v190
  %v226 = vunpack.c.l.b16 %v191
  %v227 = vunpack.c.h.b16 %v191
  %v228 = vunpack.c.l.b16 %v192
  %v229 = vunpack.c.h.b16 %v192
  %v230 = vunpack.c.l.b16 %v193
  %v231 = vunpack.c.h.b16 %v193
  %v232 = vunpack.c.l.b16 %v194
  %v233 = vunpack.c.h.b16 %v194
  %v234 = vunpack.c.l.b16 %v195
  %v235 = vunpack.c.h.b16 %v195
  %v236 = vunpack.c.l.b16 %v196
  %v237 = vunpack.c.h.b16 %v196
  %v238 = vunpack.c.l.b16 %v197
  %v239 = vunpack.c.h.b16 %v197
  %v240 = vunpack.c.l.b16 %v198
  %v241 = vunpack.c.h.b16 %v198
  %v242 = vunpack.c.l.b16 %v199
  %v243 = vunpack.c.h.b16 %v199
  %v244 = vunpack.c.l.b16 %v200
  %v245 = vunpack.c.h.b16 %v200
  %v246 = vunpack.c.l.b16 %v201
  %v247 = vunpack.c.h.b16 %v201
  %v248 = vunpack.c.l.b16 %v202
  %v249 = vunpack.c.h.b16 %v202
  %v250 = vunpack.c.l.b16 %v203
  %v251 = vunpack.c.h.b16 %v203
  %v252 = vpack.c.b16 %v220, %v220
  %v253 = vpack.c.b16 %v221, %v221
  %v254 = vpack.c.b16 %v222, %v222
  %v255 = vpack.c.b16 %v223, %v223
  %v256 = vpack.c.b16 %v224, %v224
  %v257 = vpack.c.b16 %v225, %v225
  %v258 = vpack.c.b16 %v226, %v226
  %v259 = vpack.c.b16 %v227, %v227
  %v260 = vpack.c.b16 %v228, %v228
  %v261 = vpack.c.b16 %v229, %v229
  %v262 = vpack.c.b16 %v230, %v230
  %v263 = vpack.c.b16 %v231, %v231
  %v264 = vpack.c.b16 %v232, %v232
  %v265 = vpack.c.b16 %v233, %v233
  %v266 = vpack.c.b16 %v234, %v234
  %v267 = vpack.c.b16 %v235, %v235
  %v268 = vpack.c.b16 %v236, %v236
  %v269 = vpack.c.b16 %v237, %v237
  %v270 = vpack.c.b16 %v238, %v238
  %v271 = vpack.c.b16 %v239, %v239
  %v272 = vpack.c.b16 %v240, %v240
  %v273 = vpack.c.b16 %v241, %v241
  %v274 = vpack.c.b16 %v242, %v242
  %v275 = vpack.c.b16 %v243, %v243
  %v276 = vpack.c.b16 %v244, %v244
  %v277 = vpack.c.b16 %v245, %v245
  %v278 = vpack.c.b16 %v246, %v246
  %v279 = vpack.c.b16 %v247, %v247
  %v280 = vpack.c.b16 %v248, %v248
  %v281 = vpack.c.b16 %v249, %v249
  %v282 = vpack.c.b16 %v250, %v250
  %v283 = vpack.c.b16 %v251, %v251
  %316 = vst [vmem:[%s3] sm:$0xf] %v252
  %317 = vst [vmem:[%s3 + $0x4] sm:$0xf] %v253
  %318 = vst [vmem:[%s3 + $0x8] sm:$0xf] %v254
  %319 = vst [vmem:[%s3 + $0xc] sm:$0xf] %v255
  %320 = vst [vmem:[%s3 + $0x10] sm:$0xf] %v256
  %321 = vst [vmem:[%s3 + $0x14] sm:$0xf] %v257
  %322 = vst [vmem:[%s3 + $0x18] sm:$0xf] %v258
  %323 = vst [vmem:[%s3 + $0x1c] sm:$0xf] %v259
  %324 = vst [vmem:[%s3 + $0x20] sm:$0xf] %v260
  %325 = vst [vmem:[%s3 + $0x24] sm:$0xf] %v261
  %326 = vst [vmem:[%s3 + $0x28] sm:$0xf] %v262
  %327 = vst [vmem:[%s3 + $0x2c] sm:$0xf] %v263
  %328 = vst [vmem:[%s3 + $0x30] sm:$0xf] %v264
  %329 = vst [vmem:[%s3 + $0x34] sm:$0xf] %v265
  %330 = vst [vmem:[%s3 + $0x38] sm:$0xf] %v266
  %331 = vst [vmem:[%s3 + $0x3c] sm:$0xf] %v267
  %332 = vst [vmem:[%s3 + $0x40] sm:$0xf] %v268
  %333 = vst [vmem:[%s3 + $0x44] sm:$0xf] %v269
  %334 = vst [vmem:[%s3 + $0x48] sm:$0xf] %v270
  %335 = vst [vmem:[%s3 + $0x4c] sm:$0xf] %v271
  %336 = vst [vmem:[%s3 + $0x50] sm:$0xf] %v272
  %337 = vst [vmem:[%s3 + $0x54] sm:$0xf] %v273
  %338 = vst [vmem:[%s3 + $0x58] sm:$0xf] %v274
  %339 = vst [vmem:[%s3 + $0x5c] sm:$0xf] %v275
  %340 = vst [vmem:[%s3 + $0x60] sm:$0xf] %v276
  %341 = vst [vmem:[%s3 + $0x64] sm:$0xf] %v277
  %342 = vst [vmem:[%s3 + $0x68] sm:$0xf] %v278
  %343 = vst [vmem:[%s3 + $0x6c] sm:$0xf] %v279
  %344 = vst [vmem:[%s3 + $0x70] sm:$0xf] %v280
  %345 = vst [vmem:[%s3 + $0x74] sm:$0xf] %v281
  %346 = vst [vmem:[%s3 + $0x78] sm:$0xf] %v282
  %347 = vst [vmem:[%s3 + $0x7c] sm:$0xf] %v283
  // Predicated region
  $region14: #{basic_block_forward.6} parent=0 // pred_check
    _
  $region15: #{basic_block_forward.6} parent=0 // pred_check_branch
    %349 = sbr.rel (0) target = $region17
  $region16: #{basic_block_forward.6} parent=0 // pred_region
    _
  $region17: #{basic_block_forward.6} parent=0 // pred_fallthru
    _
  // Predicated region
  $region18: #{basic_block_forward.6} parent=0 // pred_check
    _
  $region19: #{basic_block_forward.6} parent=0 // pred_check_branch
    %351 = sbr.rel (0) target = $region21
  $region20: #{basic_block_forward.6} parent=0 // pred_region
    _
  $region21: #{basic_block_forward.6} parent=0 // pred_fallthru
    _

// kernel: basic_block_forward.5
$region0: #{basic_block_forward.5}
  #allocation0 [shape = 'u32[]', space=smem, size = 0x4, offset = 0x4, fixed_abs, tag = 'smem constant byte address 0x4 - core index']
  #allocation1 [shape = 'u32[144,128]{1,0:T(1,128)}', space=vmem, size = 0x12000, scoped, tag = 'internal scratch']
  #allocation2 [shape = 'f32[256,128]{1,0:T(8,128)}', space=vmem, size = 0x20000, scoped, tag = 'scratch operand']
  %s0 = inlined_call_operand.vmem [shape: bf16[256,128], index: 0, kind: input, shape index: {}]
  %s1 = inlined_call_operand.vmem [shape: bf16[128,128], index: 1, kind: input, shape index: {}]
  %s2 = inlined_call_operand.vmem [shape: bf16[256,128], index: 2, kind: output, shape index: {0}]
  %s3 = inlined_call_operand.vmem [shape: f32[8,128], index: 3, kind: output, shape index: {1}]
  %s4 = inlined_call_operand.vmem [shape: f32[8,128], index: 4, kind: output, shape index: {2}]
  %5 = xla_tuple %s2, %s3, %s4
  %s6 = sld [smem:[#allocation0]]
  $region42: #{basic_block_forward.5} parent=0
    _
  %s8 = ssub.s32 1, %s6
  %s9 = scalar_select 0, %s8, %s6
  // Predicated region
  $region2: #{basic_block_forward.5} parent=0 // pred_check
    _
  $region3: #{basic_block_forward.5} parent=0 // pred_check_branch
    %11 = sbr.rel (0) target = $region5
  $region4: #{basic_block_forward.5} parent=0 // pred_region
    _
  $region5: #{basic_block_forward.5} parent=0 // pred_fallthru
    _
  // Predicated region
  $region6: #{basic_block_forward.5} parent=0 // pred_check
    _
  $region7: #{basic_block_forward.5} parent=0 // pred_check_branch
    %13 = sbr.rel (0) target = $region9
  $region8: #{basic_block_forward.5} parent=0 // pred_region
    _
  $region9: #{basic_block_forward.5} parent=0 // pred_fallthru
    _
  %p15 = scmp.eq.s32.totalorder 0, 0
  // Predicated region
  $region10: #{basic_block_forward.5} parent=0 // pred_check
    %p16 = pneg %p15
  $region11: #{basic_block_forward.5} parent=0 // pred_check_branch
    %18 = sbr.rel (%p16) target = $region13
  $region12: #{basic_block_forward.5} parent=0 // pred_region
    %19 = vst [vmem:[#allocation2] sm:$0xff] 0.0
    %20 = vst [vmem:[#allocation2 + $0x8] sm:$0xff] 0.0
    %21 = vst [vmem:[#allocation2 + $0x10] sm:$0xff] 0.0
    %22 = vst [vmem:[#allocation2 + $0x18] sm:$0xff] 0.0
    %23 = vst [vmem:[#allocation2 + $0x20] sm:$0xff] 0.0
    %24 = vst [vmem:[#allocation2 + $0x28] sm:$0xff] 0.0
    %25 = vst [vmem:[#allocation2 + $0x30] sm:$0xff] 0.0
    %26 = vst [vmem:[#allocation2 + $0x38] sm:$0xff] 0.0
    %27 = vst [vmem:[#allocation2 + $0x40] sm:$0xff] 0.0
    %28 = vst [vmem:[#allocation2 + $0x48] sm:$0xff] 0.0
    %29 = vst [vmem:[#allocation2 + $0x50] sm:$0xff] 0.0
    %30 = vst [vmem:[#allocation2 + $0x58] sm:$0xff] 0.0
    %31 = vst [vmem:[#allocation2 + $0x60] sm:$0xff] 0.0
    %32 = vst [vmem:[#allocation2 + $0x68] sm:$0xff] 0.0
    %33 = vst [vmem:[#allocation2 + $0x70] sm:$0xff] 0.0
    %34 = vst [vmem:[#allocation2 + $0x78] sm:$0xff] 0.0
    %35 = vst [vmem:[#allocation2 + $0x80] sm:$0xff] 0.0
    %36 = vst [vmem:[#allocation2 + $0x88] sm:$0xff] 0.0
    %37 = vst [vmem:[#allocation2 + $0x90] sm:$0xff] 0.0
    %38 = vst [vmem:[#allocation2 + $0x98] sm:$0xff] 0.0
    %39 = vst [vmem:[#allocation2 + $0xa0] sm:$0xff] 0.0
    %40 = vst [vmem:[#allocation2 + $0xa8] sm:$0xff] 0.0
    %41 = vst [vmem:[#allocation2 + $0xb0] sm:$0xff] 0.0
    %42 = vst [vmem:[#allocation2 + $0xb8] sm:$0xff] 0.0
    %43 = vst [vmem:[#allocation2 + $0xc0] sm:$0xff] 0.0
    %44 = vst [vmem:[#allocation2 + $0xc8] sm:$0xff] 0.0
    %45 = vst [vmem:[#allocation2 + $0xd0] sm:$0xff] 0.0
    %46 = vst [vmem:[#allocation2 + $0xd8] sm:$0xff] 0.0
    %47 = vst [vmem:[#allocation2 + $0xe0] sm:$0xff] 0.0
    %48 = vst [vmem:[#allocation2 + $0xe8] sm:$0xff] 0.0
    %49 = vst [vmem:[#allocation2 + $0xf0] sm:$0xff] 0.0
    %50 = vst [vmem:[#allocation2 + $0xf8] sm:$0xff] 0.0
  $region13: #{basic_block_forward.5} parent=0 // pred_fallthru
    _
  %v51 = vld [vmem:[#allocation2] sm:$0xff]
  %v52 = vld [vmem:[#allocation2 + $0x8] sm:$0xff]
  %v53 = vld [vmem:[#allocation2 + $0x10] sm:$0xff]
  %v54 = vld [vmem:[#allocation2 + $0x18] sm:$0xff]
  %v55 = vld [vmem:[#allocation2 + $0x20] sm:$0xff]
  %v56 = vld [vmem:[#allocation2 + $0x28] sm:$0xff]
  %v57 = vld [vmem:[#allocation2 + $0x30] sm:$0xff]
  %v58 = vld [vmem:[#allocation2 + $0x38] sm:$0xff]
  %v59 = vld [vmem:[#allocation2 + $0x40] sm:$0xff]
  %v60 = vld [vmem:[#allocation2 + $0x48] sm:$0xff]
  %v61 = vld [vmem:[#allocation2 + $0x50] sm:$0xff]
  %v62 = vld [vmem:[#allocation2 + $0x58] sm:$0xff]
  %v63 = vld [vmem:[#allocation2 + $0x60] sm:$0xff]
  %v64 = vld [vmem:[#allocation2 + $0x68] sm:$0xff]
  %v65 = vld [vmem:[#allocation2 + $0x70] sm:$0xff]
  %v66 = vld [vmem:[#allocation2 + $0x78] sm:$0xff]
  %v67 = vld [vmem:[#allocation2 + $0x80] sm:$0xff]
  %v68 = vld [vmem:[#allocation2 + $0x88] sm:$0xff]
  %v69 = vld [vmem:[#allocation2 + $0x90] sm:$0xff]
  %v70 = vld [vmem:[#allocation2 + $0x98] sm:$0xff]
  %v71 = vld [vmem:[#allocation2 + $0xa0] sm:$0xff]
  %v72 = vld [vmem:[#allocation2 + $0xa8] sm:$0xff]
  %v73 = vld [vmem:[#allocation2 + $0xb0] sm:$0xff]
  %v74 = vld [vmem:[#allocation2 + $0xb8] sm:$0xff]
  %v75 = vld [vmem:[#allocation2 + $0xc0] sm:$0xff]
  %v76 = vld [vmem:[#allocation2 + $0xc8] sm:$0xff]
  %v77 = vld [vmem:[#allocation2 + $0xd0] sm:$0xff]
  %v78 = vld [vmem:[#allocation2 + $0xd8] sm:$0xff]
  %v79 = vld [vmem:[#allocation2 + $0xe0] sm:$0xff]
  %v80 = vld [vmem:[#allocation2 + $0xe8] sm:$0xff]
  %v81 = vld [vmem:[#allocation2 + $0xf0] sm:$0xff]
  %v82 = vld [vmem:[#allocation2 + $0xf8] sm:$0xff]
  %v83 = vld [vmem:[%s0] sm:$0xf]
  %v84 = vld [vmem:[%s0 + $0x4] sm:$0xf]
  %v85 = vld [vmem:[%s0 + $0x8] sm:$0xf]
  %v86 = vld [vmem:[%s0 + $0xc] sm:$0xf]
  %v87 = vld [vmem:[%s0 + $0x10] sm:$0xf]
  %v88 = vld [vmem:[%s0 + $0x14] sm:$0xf]
  %v89 = vld [vmem:[%s0 + $0x18] sm:$0xf]
  %v90 = vld [vmem:[%s0 + $0x1c] sm:$0xf]
  %v91 = vld [vmem:[%s0 + $0x20] sm:$0xf]
  %v92 = vld [vmem:[%s0 + $0x24] sm:$0xf]
  %v93 = vld [vmem:[%s0 + $0x28] sm:$0xf]
  %v94 = vld [vmem:[%s0 + $0x2c] sm:$0xf]
  %v95 = vld [vmem:[%s0 + $0x30] sm:$0xf]
  %v96 = vld [vmem:[%s0 + $0x34] sm:$0xf]
  %v97 = vld [vmem:[%s0 + $0x38] sm:$0xf]
  %v98 = vld [vmem:[%s0 + $0x3c] sm:$0xf]
  %v99 = vld [vmem:[%s0 + $0x40] sm:$0xf]
  %v100 = vld [vmem:[%s0 + $0x44] sm:$0xf]
  %v101 = vld [vmem:[%s0 + $0x48] sm:$0xf]
  %v102 = vld [vmem:[%s0 + $0x4c] sm:$0xf]
  %v103 = vld [vmem:[%s0 + $0x50] sm:$0xf]
  %v104 = vld [vmem:[%s0 + $0x54] sm:$0xf]
  %v105 = vld [vmem:[%s0 + $0x58] sm:$0xf]
  %v106 = vld [vmem:[%s0 + $0x5c] sm:$0xf]
  %v107 = vld [vmem:[%s0 + $0x60] sm:$0xf]
  %v108 = vld [vmem:[%s0 + $0x64] sm:$0xf]
  %v109 = vld [vmem:[%s0 + $0x68] sm:$0xf]
  %v110 = vld [vmem:[%s0 + $0x6c] sm:$0xf]
  %v111 = vld [vmem:[%s0 + $0x70] sm:$0xf]
  %v112 = vld [vmem:[%s0 + $0x74] sm:$0xf]
  %v113 = vld [vmem:[%s0 + $0x78] sm:$0xf]
  %v114 = vld [vmem:[%s0 + $0x7c] sm:$0xf]
  %v115 = vld [vmem:[%s1] sm:$0xf]
  %v116 = vld [vmem:[%s1 + $0x4] sm:$0xf]
  %v117 = vld [vmem:[%s1 + $0x8] sm:$0xf]
  %v118 = vld [vmem:[%s1 + $0xc] sm:$0xf]
  %v119 = vld [vmem:[%s1 + $0x10] sm:$0xf]
  %v120 = vld [vmem:[%s1 + $0x14] sm:$0xf]
  %v121 = vld [vmem:[%s1 + $0x18] sm:$0xf]
  %v122 = vld [vmem:[%s1 + $0x1c] sm:$0xf]
  %v123 = vld [vmem:[%s1 + $0x20] sm:$0xf]
  %v124 = vld [vmem:[%s1 + $0x24] sm:$0xf]
  %v125 = vld [vmem:[%s1 + $0x28] sm:$0xf]
  %v126 = vld [vmem:[%s1 + $0x2c] sm:$0xf]
  %v127 = vld [vmem:[%s1 + $0x30] sm:$0xf]
  %v128 = vld [vmem:[%s1 + $0x34] sm:$0xf]
  %v129 = vld [vmem:[%s1 + $0x38] sm:$0xf]
  %v130 = vld [vmem:[%s1 + $0x3c] sm:$0xf]
  %v163 = vunpack.c.l.b16 %v83
  %v164 = vunpack.c.l.b16 %v84
  %v165 = vunpack.c.l.b16 %v85
  %v166 = vunpack.c.l.b16 %v86
  %v167 = vunpack.c.l.b16 %v87
  %v168 = vunpack.c.l.b16 %v88
  %v169 = vunpack.c.l.b16 %v89
  %v170 = vunpack.c.l.b16 %v90
  %v171 = vunpack.c.l.b16 %v91
  %v172 = vunpack.c.l.b16 %v92
  %v173 = vunpack.c.l.b16 %v93
  %v174 = vunpack.c.l.b16 %v94
  %v175 = vunpack.c.l.b16 %v95
  %v176 = vunpack.c.l.b16 %v96
  %v177 = vunpack.c.l.b16 %v97
  %v178 = vunpack.c.l.b16 %v98
  %v179 = vunpack.c.l.b16 %v99
  %v180 = vunpack.c.l.b16 %v100
  %v181 = vunpack.c.l.b16 %v101
  %v182 = vunpack.c.l.b16 %v102
  %v183 = vunpack.c.l.b16 %v103
  %v184 = vunpack.c.l.b16 %v104
  %v185 = vunpack.c.l.b16 %v105
  %v186 = vunpack.c.l.b16 %v106
  %v187 = vunpack.c.l.b16 %v107
  %v188 = vunpack.c.l.b16 %v108
  %v189 = vunpack.c.l.b16 %v109
  %v190 = vunpack.c.l.b16 %v110
  %v191 = vunpack.c.l.b16 %v111
  %v192 = vunpack.c.l.b16 %v112
  %v193 = vunpack.c.l.b16 %v113
  %v194 = vunpack.c.l.b16 %v114
  %v195 = vpack.c.b16 %v164, %v163
  %v196 = vpack.c.b16 %v166, %v165
  %v197 = vpack.c.b16 %v168, %v167
  %v198 = vpack.c.b16 %v170, %v169
  %v199 = vpack.c.b16 %v172, %v171
  %v200 = vpack.c.b16 %v174, %v173
  %v201 = vpack.c.b16 %v176, %v175
  %v202 = vpack.c.b16 %v178, %v177
  %v203 = vpack.c.b16 %v180, %v179
  %v204 = vpack.c.b16 %v182, %v181
  %v205 = vpack.c.b16 %v184, %v183
  %v206 = vpack.c.b16 %v186, %v185
  %v207 = vpack.c.b16 %v188, %v187
  %v208 = vpack.c.b16 %v190, %v189
  %v209 = vpack.c.b16 %v192, %v191
  %v210 = vpack.c.b16 %v194, %v193
  %v243 = vunpack.c.l.b16 %v115
  %v244 = vunpack.c.l.b16 %v116
  %v245 = vunpack.c.l.b16 %v117
  %v246 = vunpack.c.l.b16 %v118
  %v247 = vunpack.c.l.b16 %v119
  %v248 = vunpack.c.l.b16 %v120
  %v249 = vunpack.c.l.b16 %v121
  %v250 = vunpack.c.l.b16 %v122
  %v251 = vunpack.c.l.b16 %v123
  %v252 = vunpack.c.l.b16 %v124
  %v253 = vunpack.c.l.b16 %v125
  %v254 = vunpack.c.l.b16 %v126
  %v255 = vunpack.c.l.b16 %v127
  %v256 = vunpack.c.l.b16 %v128
  %v257 = vunpack.c.l.b16 %v129
  %v258 = vunpack.c.l.b16 %v130
  %v259 = vpack.c.b16 %v244, %v243
  %v260 = vpack.c.b16 %v246, %v245
  %v261 = vpack.c.b16 %v248, %v247
  %v262 = vpack.c.b16 %v250, %v249
  %v263 = vpack.c.b16 %v252, %v251
  %v264 = vpack.c.b16 %v254, %v253
  %v265 = vpack.c.b16 %v256, %v255
  %v266 = vpack.c.b16 %v258, %v257
  %275 = vmatprep.subr.bf16.mxu0 0
  %276 = vmatpush1.bf16.msra.mxu0 %v259
  %277 = vmatprep.subr.bf16.mxu0 0
  %278 = vmatpush1.bf16.msra.mxu0 %v260
  %279 = vmatprep.subr.bf16.mxu0 0
  %280 = vmatpush1.bf16.msra.mxu0 %v261
  %281 = vmatprep.subr.bf16.mxu0 0
  %282 = vmatpush1.bf16.msra.mxu0 %v262
  %283 = vmatprep.subr.bf16.mxu0 0
  %284 = vmatpush1.bf16.msra.mxu0 %v263
  %285 = vmatprep.subr.bf16.mxu0 0
  %286 = vmatpush1.bf16.msra.mxu0 %v264
  %287 = vmatprep.subr.bf16.mxu0 0
  %288 = vmatpush1.bf16.msra.mxu0 %v265
  %289 = vmatprep.subr.bf16.mxu0 0
  %290 = vmatpush1.bf16.msra.mxu0 %v266
  %291 = vmatprep.subr.bf16.mxu0 0
  %292 = vmatpush1.bf16.msra.mxu0 0
  %293 = vmatprep.subr.bf16.mxu0 0
  %294 = vmatpush1.bf16.msra.mxu0 0
  %295 = vmatprep.subr.bf16.mxu0 0
  %296 = vmatpush1.bf16.msra.mxu0 0
  %297 = vmatprep.subr.bf16.mxu0 0
  %298 = vmatpush1.bf16.msra.mxu0 0
  %299 = vmatprep.subr.bf16.mxu0 0
  %300 = vmatpush1.bf16.msra.mxu0 0
  %301 = vmatprep.subr.bf16.mxu0 0
  %302 = vmatpush1.bf16.msra.mxu0 0
  %303 = vmatprep.subr.bf16.mxu0 0
  %304 = vmatpush1.bf16.msra.mxu0 0
  %305 = vmatprep.subr.bf16.mxu0 0
  %306 = vmatpush1.bf16.msra.mxu0 0
  %307 = vmatprep.mubr.bf16.mxu0 0
  %308 = vmatmul.mubr.bf16.gmra.mrb[0].mxu0 %v195
  %v309 = vpop.f32.mrb[0].mxu0
  %v310 = vadd.f32 0.0, %v309
  %v311 = vpop.f32.mrb[0].mxu0
  %v312 = vpop.f32.mrb[0].mxu0
  %v313 = vadd.f32 0.0, %v312
  %v314 = vpop.f32.mrb[0].mxu0
  %315 = vmatprep.mubr.bf16.mxu0 0
  %316 = vmatmul.mubr.bf16.gmra.mrb[0].mxu0 %v196
  %v317 = vpop.f32.mrb[0].mxu0
  %v318 = vadd.f32 0.0, %v317
  %v319 = vpop.f32.mrb[0].mxu0
  %v320 = vpop.f32.mrb[0].mxu0
  %v321 = vadd.f32 0.0, %v320
  %v322 = vpop.f32.mrb[0].mxu0
  %323 = vmatprep.mubr.bf16.mxu0 0
  %324 = vmatmul.mubr.bf16.gmra.mrb[0].mxu0 %v197
  %v325 = vpop.f32.mrb[0].mxu0
  %v326 = vadd.f32 0.0, %v325
  %v327 = vpop.f32.mrb[0].mxu0
  %v328 = vpop.f32.mrb[0].mxu0
  %v329 = vadd.f32 0.0, %v328
  %v330 = vpop.f32.mrb[0].mxu0
  %331 = vmatprep.mubr.bf16.mxu0 0
  %332 = vmatmul.mubr.bf16.gmra.mrb[0].mxu0 %v198
  %v333 = vpop.f32.mrb[0].mxu0
  %v334 = vadd.f32 0.0, %v333
  %v335 = vpop.f32.mrb[0].mxu0
  %v336 = vpop.f32.mrb[0].mxu0
  %v337 = vadd.f32 0.0, %v336
  %v338 = vpop.f32.mrb[0].mxu0
  %339 = vmatprep.mubr.bf16.mxu0 0
  %340 = vmatmul.mubr.bf16.gmra.mrb[0].mxu0 %v199
  %v341 = vpop.f32.mrb[0].mxu0
  %v342 = vadd.f32 0.0, %v341
  %v343 = vpop.f32.mrb[0].mxu0
  %v344 = vpop.f32.mrb[0].mxu0
  %v345 = vadd.f32 0.0, %v344
  %v346 = vpop.f32.mrb[0].mxu0
  %347 = vmatprep.mubr.bf16.mxu0 0
  %348 = vmatmul.mubr.bf16.gmra.mrb[0].mxu0 %v200
  %v349 = vpop.f32.mrb[0].mxu0
  %v350 = vadd.f32 0.0, %v349
  %v351 = vpop.f32.mrb[0].mxu0
  %v352 = vpop.f32.mrb[0].mxu0
  %v353 = vadd.f32 0.0, %v352
  %v354 = vpop.f32.mrb[0].mxu0
  %355 = vmatprep.mubr.bf16.mxu0 0
  %356 = vmatmul.mubr.bf16.gmra.mrb[0].mxu0 %v201
  %v357 = vpop.f32.mrb[0].mxu0
  %v358 = vadd.f32 0.0, %v357
  %v359 = vpop.f32.mrb[0].mxu0
  %v360 = vpop.f32.mrb[0].mxu0
  %v361 = vadd.f32 0.0, %v360
  %v362 = vpop.f32.mrb[0].mxu0
  %363 = vmatprep.mubr.bf16.mxu0 0
  %364 = vmatmul.mubr.bf16.gmra.mrb[0].mxu0 %v202
  %v365 = vpop.f32.mrb[0].mxu0
  %v366 = vadd.f32 0.0, %v365
  %v367 = vpop.f32.mrb[0].mxu0
  %v368 = vpop.f32.mrb[0].mxu0
  %v369 = vadd.f32 0.0, %v368
  %v370 = vpop.f32.mrb[0].mxu0
  %371 = vmatprep.mubr.bf16.mxu0 0
  %372 = vmatmul.mubr.bf16.gmra.mrb[0].mxu0 %v203
  %v373 = vpop.f32.mrb[0].mxu0
  %v374 = vadd.f32 0.0, %v373
  %v375 = vpop.f32.mrb[0].mxu0
  %v376 = vpop.f32.mrb[0].mxu0
  %v377 = vadd.f32 0.0, %v376
  %v378 = vpop.f32.mrb[0].mxu0
  %379 = vmatprep.mubr.bf16.mxu0 0
  %380 = vmatmul.mubr.bf16.gmra.mrb[0].mxu0 %v204
  %v381 = vpop.f32.mrb[0].mxu0
  %v382 = vadd.f32 0.0, %v381
  %v383 = vpop.f32.mrb[0].mxu0
  %v384 = vpop.f32.mrb[0].mxu0
  %v385 = vadd.f32 0.0, %v384
  %v386 = vpop.f32.mrb[0].mxu0
  %387 = vmatprep.mubr.bf16.mxu0 0
  %388 = vmatmul.mubr.bf16.gmra.mrb[0].mxu0 %v205
  %v389 = vpop.f32.mrb[0].mxu0
  %v390 = vadd.f32 0.0, %v389
  %v391 = vpop.f32.mrb[0].mxu0
  %v392 = vpop.f32.mrb[0].mxu0
  %v393 = vadd.f32 0.0, %v392
  %v394 = vpop.f32.mrb[0].mxu0
  %395 = vmatprep.mubr.bf16.mxu0 0
  %396 = vmatmul.mubr.bf16.gmra.mrb[0].mxu0 %v206
  %v397 = vpop.f32.mrb[0].mxu0
  %v398 = vadd.f32 0.0, %v397
  %v399 = vpop.f32.mrb[0].mxu0
  %v400 = vpop.f32.mrb[0].mxu0
  %v401 = vadd.f32 0.0, %v400
  %v402 = vpop.f32.mrb[0].mxu0
  %403 = vmatprep.mubr.bf16.mxu0 0
  %404 = vmatmul.mubr.bf16.gmra.mrb[0].mxu0 %v207
  %v405 = vpop.f32.mrb[0].mxu0
  %v406 = vadd.f32 0.0, %v405
  %v407 = vpop.f32.mrb[0].mxu0
  %v408 = vpop.f32.mrb[0].mxu0
  %v409 = vadd.f32 0.0, %v408
  %v410 = vpop.f32.mrb[0].mxu0
  %411 = vmatprep.mubr.bf16.mxu0 0
  %412 = vmatmul.mubr.bf16.gmra.mrb[0].mxu0 %v208
  %v413 = vpop.f32.mrb[0].mxu0
  %v414 = vadd.f32 0.0, %v413
  %v415 = vpop.f32.mrb[0].mxu0
  %v416 = vpop.f32.mrb[0].mxu0
  %v417 = vadd.f32 0.0, %v416
  %v418 = vpop.f32.mrb[0].mxu0
  %419 = vmatprep.mubr.bf16.mxu0 0
  %420 = vmatmul.mubr.bf16.gmra.mrb[0].mxu0 %v209
  %v421 = vpop.f32.mrb[0].mxu0
  %v422 = vadd.f32 0.0, %v421
  %v423 = vpop.f32.mrb[0].mxu0
  %v424 = vpop.f32.mrb[0].mxu0
  %v425 = vadd.f32 0.0, %v424
  %v426 = vpop.f32.mrb[0].mxu0
  %427 = vmatprep.mubr.bf16.mxu0 0
  %428 = vmatmul.mubr.bf16.gmra.mrb[0].mxu0 %v210
  %v429 = vpop.f32.mrb[0].mxu0
  %v430 = vadd.f32 0.0, %v429
  %v431 = vpop.f32.mrb[0].mxu0
  %v432 = vpop.f32.mrb[0].mxu0
  %v433 = vadd.f32 0.0, %v432
  %v434 = vpop.f32.mrb[0].mxu0
  %435 = vdwg.mxu0
  %v436 = vadd.f32 %v51, %v310
  %v437 = vadd.f32 %v52, %v313
  %v438 = vadd.f32 %v53, %v318
  %v439 = vadd.f32 %v54, %v321
  %v440 = vadd.f32 %v55, %v326
  %v441 = vadd.f32 %v56, %v329
  %v442 = vadd.f32 %v57, %v334
  %v443 = vadd.f32 %v58, %v337
  %v444 = vadd.f32 %v59, %v342
  %v445 = vadd.f32 %v60, %v345
  %v446 = vadd.f32 %v61, %v350
  %v447 = vadd.f32 %v62, %v353
  %v448 = vadd.f32 %v63, %v358
  %v449 = vadd.f32 %v64, %v361
  %v450 = vadd.f32 %v65, %v366
  %v451 = vadd.f32 %v66, %v369
  %v452 = vadd.f32 %v67, %v374
  %v453 = vadd.f32 %v68, %v377
  %v454 = vadd.f32 %v69, %v382
  %v455 = vadd.f32 %v70, %v385
  %v456 = vadd.f32 %v71, %v390
  %v457 = vadd.f32 %v72, %v393
  %v458 = vadd.f32 %v73, %v398
  %v459 = vadd.f32 %v74, %v401
  %v460 = vadd.f32 %v75, %v406
  %v461 = vadd.f32 %v76, %v409
  %v462 = vadd.f32 %v77, %v414
  %v463 = vadd.f32 %v78, %v417
  %v464 = vadd.f32 %v79, %v422
  %v465 = vadd.f32 %v80, %v425
  %v466 = vadd.f32 %v81, %v430
  %v467 = vadd.f32 %v82, %v433
  %468 = vst [vmem:[#allocation2] sm:$0xff] %v436
  %469 = vst [vmem:[#allocation2 + $0x8] sm:$0xff] %v437
  %470 = vst [vmem:[#allocation2 + $0x10] sm:$0xff] %v438
  %471 = vst [vmem:[#allocation2 + $0x18] sm:$0xff] %v439
  %472 = vst [vmem:[#allocation2 + $0x20] sm:$0xff] %v440
  %473 = vst [vmem:[#allocation2 + $0x28] sm:$0xff] %v441
  %474 = vst [vmem:[#allocation2 + $0x30] sm:$0xff] %v442
  %475 = vst [vmem:[#allocation2 + $0x38] sm:$0xff] %v443
  %476 = vst [vmem:[#allocation2 + $0x40] sm:$0xff] %v444
  %477 = vst [vmem:[#allocation2 + $0x48] sm:$0xff] %v445
  %478 = vst [vmem:[#allocation2 + $0x50] sm:$0xff] %v446
  %479 = vst [vmem:[#allocation2 + $0x58] sm:$0xff] %v447
  %480 = vst [vmem:[#allocation2 + $0x60] sm:$0xff] %v448
  %481 = vst [vmem:[#allocation2 + $0x68] sm:$0xff] %v449
  %482 = vst [vmem:[#allocation2 + $0x70] sm:$0xff] %v450
  %483 = vst [vmem:[#allocation2 + $0x78] sm:$0xff] %v451
  %484 = vst [vmem:[#allocation2 + $0x80] sm:$0xff] %v452
  %485 = vst [vmem:[#allocation2 + $0x88] sm:$0xff] %v453
  %486 = vst [vmem:[#allocation2 + $0x90] sm:$0xff] %v454
  %487 = vst [vmem:[#allocation2 + $0x98] sm:$0xff] %v455
  %488 = vst [vmem:[#allocation2 + $0xa0] sm:$0xff] %v456
  %489 = vst [vmem:[#allocation2 + $0xa8] sm:$0xff] %v457
  %490 = vst [vmem:[#allocation2 + $0xb0] sm:$0xff] %v458
  %491 = vst [vmem:[#allocation2 + $0xb8] sm:$0xff] %v459
  %492 = vst [vmem:[#allocation2 + $0xc0] sm:$0xff] %v460
  %493 = vst [vmem:[#allocation2 + $0xc8] sm:$0xff] %v461
  %494 = vst [vmem:[#allocation2 + $0xd0] sm:$0xff] %v462
  %495 = vst [vmem:[#allocation2 + $0xd8] sm:$0xff] %v463
  %496 = vst [vmem:[#allocation2 + $0xe0] sm:$0xff] %v464
  %497 = vst [vmem:[#allocation2 + $0xe8] sm:$0xff] %v465
  %498 = vst [vmem:[#allocation2 + $0xf0] sm:$0xff] %v466
  %499 = vst [vmem:[#allocation2 + $0xf8] sm:$0xff] %v467
  // Predicated region
  $region14: #{basic_block_forward.5} parent=0 // pred_check
    %p500 = pneg %p15
  $region15: #{basic_block_forward.5} parent=0 // pred_check_branch
    %502 = sbr.rel (%p500) target = $region17
  $region16: #{basic_block_forward.5} parent=0 // pred_region
    %v503 = vld [vmem:[#allocation2] sm:$0xff]
    %v504 = vld [vmem:[#allocation2 + $0x8] sm:$0xff]
    %v505 = vld [vmem:[#allocation2 + $0x10] sm:$0xff]
    %v506 = vld [vmem:[#allocation2 + $0x18] sm:$0xff]
    %v507 = vld [vmem:[#allocation2 + $0x20] sm:$0xff]
    %v508 = vld [vmem:[#allocation2 + $0x28] sm:$0xff]
    %v509 = vld [vmem:[#allocation2 + $0x30] sm:$0xff]
    %v510 = vld [vmem:[#allocation2 + $0x38] sm:$0xff]
    %v511 = vld [vmem:[#allocation2 + $0x40] sm:$0xff]
    %v512 = vld [vmem:[#allocation2 + $0x48] sm:$0xff]
    %v513 = vld [vmem:[#allocation2 + $0x50] sm:$0xff]
    %v514 = vld [vmem:[#allocation2 + $0x58] sm:$0xff]
    %v515 = vld [vmem:[#allocation2 + $0x60] sm:$0xff]
    %v516 = vld [vmem:[#allocation2 + $0x68] sm:$0xff]
    %v517 = vld [vmem:[#allocation2 + $0x70] sm:$0xff]
    %v518 = vld [vmem:[#allocation2 + $0x78] sm:$0xff]
    %v519 = vld [vmem:[#allocation2 + $0x80] sm:$0xff]
    %v520 = vld [vmem:[#allocation2 + $0x88] sm:$0xff]
    %v521 = vld [vmem:[#allocation2 + $0x90] sm:$0xff]
    %v522 = vld [vmem:[#allocation2 + $0x98] sm:$0xff]
    %v523 = vld [vmem:[#allocation2 + $0xa0] sm:$0xff]
    %v524 = vld [vmem:[#allocation2 + $0xa8] sm:$0xff]
    %v525 = vld [vmem:[#allocation2 + $0xb0] sm:$0xff]
    %v526 = vld [vmem:[#allocation2 + $0xb8] sm:$0xff]
    %v527 = vld [vmem:[#allocation2 + $0xc0] sm:$0xff]
    %v528 = vld [vmem:[#allocation2 + $0xc8] sm:$0xff]
    %v529 = vld [vmem:[#allocation2 + $0xd0] sm:$0xff]
    %v530 = vld [vmem:[#allocation2 + $0xd8] sm:$0xff]
    %v531 = vld [vmem:[#allocation2 + $0xe0] sm:$0xff]
    %v532 = vld [vmem:[#allocation2 + $0xe8] sm:$0xff]
    %v533 = vld [vmem:[#allocation2 + $0xf0] sm:$0xff]
    %v534 = vld [vmem:[#allocation2 + $0xf8] sm:$0xff]
    %v535 = vpack.c.bf16 %v504, %v503
    %v536 = vpack.c.bf16 %v506, %v505
    %v537 = vpack.c.bf16 %v508, %v507
    %v538 = vpack.c.bf16 %v510, %v509
    %v539 = vpack.c.bf16 %v512, %v511
    %v540 = vpack.c.bf16 %v514, %v513
    %v541 = vpack.c.bf16 %v516, %v515
    %v542 = vpack.c.bf16 %v518, %v517
    %v543 = vpack.c.bf16 %v520, %v519
    %v544 = vpack.c.bf16 %v522, %v521
    %v545 = vpack.c.bf16 %v524, %v523
    %v546 = vpack.c.bf16 %v526, %v525
    %v547 = vpack.c.bf16 %v528, %v527
    %v548 = vpack.c.bf16 %v530, %v529
    %v549 = vpack.c.bf16 %v532, %v531
    %v550 = vpack.c.bf16 %v534, %v533
    %v567 = vunpack.c.l.b16 %v535
    %v568 = vunpack.c.h.b16 %v535
    %v569 = vunpack.c.l.b16 %v536
    %v570 = vunpack.c.h.b16 %v536
    %v571 = vunpack.c.l.b16 %v537
    %v572 = vunpack.c.h.b16 %v537
    %v573 = vunpack.c.l.b16 %v538
    %v574 = vunpack.c.h.b16 %v538
    %v575 = vunpack.c.l.b16 %v539
    %v576 = vunpack.c.h.b16 %v539
    %v577 = vunpack.c.l.b16 %v540
    %v578 = vunpack.c.h.b16 %v540
    %v579 = vunpack.c.l.b16 %v541
    %v580 = vunpack.c.h.b16 %v541
    %v581 = vunpack.c.l.b16 %v542
    %v582 = vunpack.c.h.b16 %v542
    %v583 = vunpack.c.l.b16 %v543
    %v584 = vunpack.c.h.b16 %v543
    %v585 = vunpack.c.l.b16 %v544
    %v586 = vunpack.c.h.b16 %v544
    %v587 = vunpack.c.l.b16 %v545
    %v588 = vunpack.c.h.b16 %v545
    %v589 = vunpack.c.l.b16 %v546
    %v590 = vunpack.c.h.b16 %v546
    %v591 = vunpack.c.l.b16 %v547
    %v592 = vunpack.c.h.b16 %v547
    %v593 = vunpack.c.l.b16 %v548
    %v594 = vunpack.c.h.b16 %v548
    %v595 = vunpack.c.l.b16 %v549
    %v596 = vunpack.c.h.b16 %v549
    %v597 = vunpack.c.l.b16 %v550
    %v598 = vunpack.c.h.b16 %v550
    %v599 = vpack.c.b16 %v567, %v567
    %v600 = vpack.c.b16 %v568, %v568
    %v601 = vpack.c.b16 %v569, %v569
    %v602 = vpack.c.b16 %v570, %v570
    %v603 = vpack.c.b16 %v571, %v571
    %v604 = vpack.c.b16 %v572, %v572
    %v605 = vpack.c.b16 %v573, %v573
    %v606 = vpack.c.b16 %v574, %v574
    %v607 = vpack.c.b16 %v575, %v575
    %v608 = vpack.c.b16 %v576, %v576
    %v609 = vpack.c.b16 %v577, %v577
    %v610 = vpack.c.b16 %v578, %v578
    %v611 = vpack.c.b16 %v579, %v579
    %v612 = vpack.c.b16 %v580, %v580
    %v613 = vpack.c.b16 %v581, %v581
    %v614 = vpack.c.b16 %v582, %v582
    %v615 = vpack.c.b16 %v583, %v583
    %v616 = vpack.c.b16 %v584, %v584
    %v617 = vpack.c.b16 %v585, %v585
    %v618 = vpack.c.b16 %v586, %v586
    %v619 = vpack.c.b16 %v587, %v587
    %v620 = vpack.c.b16 %v588, %v588
    %v621 = vpack.c.b16 %v589, %v589
    %v622 = vpack.c.b16 %v590, %v590
    %v623 = vpack.c.b16 %v591, %v591
    %v624 = vpack.c.b16 %v592, %v592
    %v625 = vpack.c.b16 %v593, %v593
    %v626 = vpack.c.b16 %v594, %v594
    %v627 = vpack.c.b16 %v595, %v595
    %v628 = vpack.c.b16 %v596, %v596
    %v629 = vpack.c.b16 %v597, %v597
    %v630 = vpack.c.b16 %v598, %v598
    %663 = vst [vmem:[%s2] sm:$0xf] %v599
    %664 = vst [vmem:[%s2 + $0x4] sm:$0xf] %v600
    %665 = vst [vmem:[%s2 + $0x8] sm:$0xf] %v601
    %666 = vst [vmem:[%s2 + $0xc] sm:$0xf] %v602
    %667 = vst [vmem:[%s2 + $0x10] sm:$0xf] %v603
    %668 = vst [vmem:[%s2 + $0x14] sm:$0xf] %v604
    %669 = vst [vmem:[%s2 + $0x18] sm:$0xf] %v605
    %670 = vst [vmem:[%s2 + $0x1c] sm:$0xf] %v606
    %671 = vst [vmem:[%s2 + $0x20] sm:$0xf] %v607
    %672 = vst [vmem:[%s2 + $0x24] sm:$0xf] %v608
    %673 = vst [vmem:[%s2 + $0x28] sm:$0xf] %v609
    %674 = vst [vmem:[%s2 + $0x2c] sm:$0xf] %v610
    %675 = vst [vmem:[%s2 + $0x30] sm:$0xf] %v611
    %676 = vst [vmem:[%s2 + $0x34] sm:$0xf] %v612
    %677 = vst [vmem:[%s2 + $0x38] sm:$0xf] %v613
    %678 = vst [vmem:[%s2 + $0x3c] sm:$0xf] %v614
    %679 = vst [vmem:[%s2 + $0x40] sm:$0xf] %v615
    %680 = vst [vmem:[%s2 + $0x44] sm:$0xf] %v616
    %681 = vst [vmem:[%s2 + $0x48] sm:$0xf] %v617
    %682 = vst [vmem:[%s2 + $0x4c] sm:$0xf] %v618
    %683 = vst [vmem:[%s2 + $0x50] sm:$0xf] %v619
    %684 = vst [vmem:[%s2 + $0x54] sm:$0xf] %v620
    %685 = vst [vmem:[%s2 + $0x58] sm:$0xf] %v621
    %686 = vst [vmem:[%s2 + $0x5c] sm:$0xf] %v622
    %687 = vst [vmem:[%s2 + $0x60] sm:$0xf] %v623
    %688 = vst [vmem:[%s2 + $0x64] sm:$0xf] %v624
    %689 = vst [vmem:[%s2 + $0x68] sm:$0xf] %v625
    %690 = vst [vmem:[%s2 + $0x6c] sm:$0xf] %v626
    %691 = vst [vmem:[%s2 + $0x70] sm:$0xf] %v627
    %692 = vst [vmem:[%s2 + $0x74] sm:$0xf] %v628
    %693 = vst [vmem:[%s2 + $0x78] sm:$0xf] %v629
    %694 = vst [vmem:[%s2 + $0x7c] sm:$0xf] %v630
    %v695 = vadd.f32 %v503, %v504
    %v696 = vadd.f32 %v695, %v505
    %v697 = vadd.f32 %v696, %v506
    %v698 = vadd.f32 %v697, %v507
    %v699 = vadd.f32 %v698, %v508
    %v700 = vadd.f32 %v699, %v509
    %v701 = vadd.f32 %v700, %v510
    %v702 = vadd.f32 %v701, %v511
    %v703 = vadd.f32 %v702, %v512
    %v704 = vadd.f32 %v703, %v513
    %v705 = vadd.f32 %v704, %v514
    %v706 = vadd.f32 %v705, %v515
    %v707 = vadd.f32 %v706, %v516
    %v708 = vadd.f32 %v707, %v517
    %v709 = vadd.f32 %v708, %v518
    %v710 = vadd.f32 %v709, %v519
    %v711 = vadd.f32 %v710, %v520
    %v712 = vadd.f32 %v711, %v521
    %v713 = vadd.f32 %v712, %v522
    %v714 = vadd.f32 %v713, %v523
    %v715 = vadd.f32 %v714, %v524
    %v716 = vadd.f32 %v715, %v525
    %v717 = vadd.f32 %v716, %v526
    %v718 = vadd.f32 %v717, %v527
    %v719 = vadd.f32 %v718, %v528
    %v720 = vadd.f32 %v719, %v529
    %v721 = vadd.f32 %v720, %v530
    %v722 = vadd.f32 %v721, %v531
    %v723 = vadd.f32 %v722, %v532
    %v724 = vadd.f32 %v723, %v533
    %v725 = vadd.f32 %v724, %v534
    %v726 = vrot.slane %v725, 4
    %v727 = vadd.f32 %v725, %v726
    %v728 = vrot.slane %v727, 2
    %v729 = vadd.f32 %v727, %v728
    %v730 = vrot.slane %v729, 1
    %v731 = vadd.f32 %v729, %v730
    %v732 = vmul.f32 %v503, %v503
    %v733 = vmul.f32 %v504, %v504
    %v734 = vmul.f32 %v505, %v505
    %v735 = vmul.f32 %v506, %v506
    %v736 = vmul.f32 %v507, %v507
    %v737 = vmul.f32 %v508, %v508
    %v738 = vmul.f32 %v509, %v509
    %v739 = vmul.f32 %v510, %v510
    %v740 = vmul.f32 %v511, %v511
    %v741 = vmul.f32 %v512, %v512
    %v742 = vmul.f32 %v513, %v513
    %v743 = vmul.f32 %v514, %v514
    %v744 = vmul.f32 %v515, %v515
    %v745 = vmul.f32 %v516, %v516
    %v746 = vmul.f32 %v517, %v517
    %v747 = vmul.f32 %v518, %v518
    %v748 = vmul.f32 %v519, %v519
    %v749 = vmul.f32 %v520, %v520
    %v750 = vmul.f32 %v521, %v521
    %v751 = vmul.f32 %v522, %v522
    %v752 = vmul.f32 %v523, %v523
    %v753 = vmul.f32 %v524, %v524
    %v754 = vmul.f32 %v525, %v525
    %v755 = vmul.f32 %v526, %v526
    %v756 = vmul.f32 %v527, %v527
    %v757 = vmul.f32 %v528, %v528
    %v758 = vmul.f32 %v529, %v529
    %v759 = vmul.f32 %v530, %v530
    %v760 = vmul.f32 %v531, %v531
    %v761 = vmul.f32 %v532, %v532
    %v762 = vmul.f32 %v533, %v533
    %v763 = vmul.f32 %v534, %v534
    %v764 = vadd.f32 %v732, %v733
    %v765 = vadd.f32 %v764, %v734
    %v766 = vadd.f32 %v765, %v735
    %v767 = vadd.f32 %v766, %v736
    %v768 = vadd.f32 %v767, %v737
    %v769 = vadd.f32 %v768, %v738
    %v770 = vadd.f32 %v769, %v739
    %v771 = vadd.f32 %v770, %v740
    %v772 = vadd.f32 %v771, %v741
    %v773 = vadd.f32 %v772, %v742
    %v774 = vadd.f32 %v773, %v743
    %v775 = vadd.f32 %v774, %v744
    %v776 = vadd.f32 %v775, %v745
    %v777 = vadd.f32 %v776, %v746
    %v778 = vadd.f32 %v777, %v747
    %v779 = vadd.f32 %v778, %v748
    %v780 = vadd.f32 %v779, %v749
    %v781 = vadd.f32 %v780, %v750
    %v782 = vadd.f32 %v781, %v751
    %v783 = vadd.f32 %v782, %v752
    %v784 = vadd.f32 %v783, %v753
    %v785 = vadd.f32 %v784, %v754
    %v786 = vadd.f32 %v785, %v755
    %v787 = vadd.f32 %v786, %v756
    %v788 = vadd.f32 %v787, %v757
    %v789 = vadd.f32 %v788, %v758
    %v790 = vadd.f32 %v789, %v759
    %v791 = vadd.f32 %v790, %v760
    %v792 = vadd.f32 %v791, %v761
    %v793 = vadd.f32 %v792, %v762
    %v794 = vadd.f32 %v793, %v763
    %v795 = vrot.slane %v794, 4
    %v796 = vadd.f32 %v794, %v795
    %v797 = vrot.slane %v796, 2
    %v798 = vadd.f32 %v796, %v797
    %v799 = vrot.slane %v798, 1
    %v800 = vadd.f32 %v798, %v799
    %801 = vst [vmem:[%s3] sm:$0xff] %v731
    %802 = vst [vmem:[%s4] sm:$0xff] %v800
  $region17: #{basic_block_forward.5} parent=0 // pred_fallthru
    _
  // Predicated region
  $region18: #{basic_block_forward.5} parent=0 // pred_check
    _
  $region19: #{basic_block_forward.5} parent=0 // pred_check_branch
    %804 = sbr.rel (0) target = $region21
  $region20: #{basic_block_forward.5} parent=0 // pred_region
    _
  $region21: #{basic_block_forward.5} parent=0 // pred_fallthru
    _
  // Predicated region
  $region22: #{basic_block_forward.5} parent=0 // pred_check
    _
  $region23: #{basic_block_forward.5} parent=0 // pred_check_branch
    %806 = sbr.rel (0) target = $region25
  $region24: #{basic_block_forward.5} parent=0 // pred_region
    _
  $region25: #{basic_block_forward.5} parent=0 // pred_fallthru
    _
  // Predicated region
  $region26: #{basic_block_forward.5} parent=0 // pred_check
    _
  $region27: #{basic_block_forward.5} parent=0 // pred_check_branch
    %808 = sbr.rel (0) target = $region29
  $region28: #{basic_block_forward.5} parent=0 // pred_region
    _
  $region29: #{basic_block_forward.5} parent=0 // pred_fallthru
    _
  // Predicated region
  $region30: #{basic_block_forward.5} parent=0 // pred_check
    _
  $region31: #{basic_block_forward.5} parent=0 // pred_check_branch
    %810 = sbr.rel (0) target = $region33
  $region32: #{basic_block_forward.5} parent=0 // pred_region
    _
  $region33: #{basic_block_forward.5} parent=0 // pred_fallthru
    _
  // Predicated region
  $region34: #{basic_block_forward.5} parent=0 // pred_check
    _
  $region35: #{basic_block_forward.5} parent=0 // pred_check_branch
    %812 = sbr.rel (0) target = $region37
  $region36: #{basic_block_forward.5} parent=0 // pred_region
    _
  $region37: #{basic_block_forward.5} parent=0 // pred_fallthru
    _
  // Predicated region
  $region38: #{basic_block_forward.5} parent=0 // pred_check
    _
  $region39: #{basic_block_forward.5} parent=0 // pred_check_branch
    %814 = sbr.rel (0) target = $region41
  $region40: #{basic_block_forward.5} parent=0 // pred_region
    _
  $region41: #{basic_block_forward.5} parent=0 // pred_fallthru
    _

// kernel: basic_block_forward.9
$region0: #{basic_block_forward.9}
  #allocation0 [shape = 'u32[]', space=smem, size = 0x4, offset = 0x4, fixed_abs, tag = 'smem constant byte address 0x4 - core index']
  #allocation1 [shape = 'u32[144,128]{1,0:T(1,128)}', space=vmem, size = 0x12000, scoped, tag = 'internal scratch']
  %s0 = inlined_call_operand.vmem [shape: bf16[256,128], index: 0, kind: input, shape index: {}]
  %s1 = inlined_call_operand.vmem [shape: f32[1,128], index: 1, kind: input, shape index: {}]
  %s2 = inlined_call_operand.vmem [shape: f32[1,128], index: 2, kind: input, shape index: {}]
  %s3 = inlined_call_operand.vmem [shape: bf16[256,128], index: 3, kind: input, shape index: {}]
  %s4 = inlined_call_operand.vmem [shape: f32[1,128], index: 4, kind: input, shape index: {}]
  %s5 = inlined_call_operand.vmem [shape: f32[1,128], index: 5, kind: input, shape index: {}]
  %s6 = inlined_call_operand.vmem [shape: f32[256,128], index: 6, kind: output, shape index: {}]
  %s7 = sld [smem:[#allocation0]]
  $region34: #{basic_block_forward.9} parent=0
    _
  %s9 = ssub.s32 1, %s7
  %s10 = scalar_select 0, %s9, %s7
  // Predicated region
  $region2: #{basic_block_forward.9} parent=0 // pred_check
    _
  $region3: #{basic_block_forward.9} parent=0 // pred_check_branch
    %12 = sbr.rel (0) target = $region5
  $region4: #{basic_block_forward.9} parent=0 // pred_region
    _
  $region5: #{basic_block_forward.9} parent=0 // pred_fallthru
    _
  // Predicated region
  $region6: #{basic_block_forward.9} parent=0 // pred_check
    _
  $region7: #{basic_block_forward.9} parent=0 // pred_check_branch
    %14 = sbr.rel (0) target = $region9
  $region8: #{basic_block_forward.9} parent=0 // pred_region
    _
  $region9: #{basic_block_forward.9} parent=0 // pred_fallthru
    _
  // Predicated region
  $region10: #{basic_block_forward.9} parent=0 // pred_check
    _
  $region11: #{basic_block_forward.9} parent=0 // pred_check_branch
    %16 = sbr.rel (0) target = $region13
  $region12: #{basic_block_forward.9} parent=0 // pred_region
    _
  $region13: #{basic_block_forward.9} parent=0 // pred_fallthru
    _
  // Predicated region
  $region14: #{basic_block_forward.9} parent=0 // pred_check
    _
  $region15: #{basic_block_forward.9} parent=0 // pred_check_branch
    %18 = sbr.rel (0) target = $region17
  $region16: #{basic_block_forward.9} parent=0 // pred_region
    _
  $region17: #{basic_block_forward.9} parent=0 // pred_fallthru
    _
  // Predicated region
  $region18: #{basic_block_forward.9} parent=0 // pred_check
    _
  $region19: #{basic_block_forward.9} parent=0 // pred_check_branch
    %20 = sbr.rel (0) target = $region21
  $region20: #{basic_block_forward.9} parent=0 // pred_region
    _
  $region21: #{basic_block_forward.9} parent=0 // pred_fallthru
    _
  // Predicated region
  $region22: #{basic_block_forward.9} parent=0 // pred_check
    _
  $region23: #{basic_block_forward.9} parent=0 // pred_check_branch
    %22 = sbr.rel (0) target = $region25
  $region24: #{basic_block_forward.9} parent=0 // pred_region
    _
  $region25: #{basic_block_forward.9} parent=0 // pred_fallthru
    _
  %v23 = vld [vmem:[%s0] sm:$0xf]
  %v24 = vld [vmem:[%s0 + $0x4] sm:$0xf]
  %v25 = vld [vmem:[%s0 + $0x8] sm:$0xf]
  %v26 = vld [vmem:[%s0 + $0xc] sm:$0xf]
  %v27 = vld [vmem:[%s0 + $0x10] sm:$0xf]
  %v28 = vld [vmem:[%s0 + $0x14] sm:$0xf]
  %v29 = vld [vmem:[%s0 + $0x18] sm:$0xf]
  %v30 = vld [vmem:[%s0 + $0x1c] sm:$0xf]
  %v31 = vld [vmem:[%s0 + $0x20] sm:$0xf]
  %v32 = vld [vmem:[%s0 + $0x24] sm:$0xf]
  %v33 = vld [vmem:[%s0 + $0x28] sm:$0xf]
  %v34 = vld [vmem:[%s0 + $0x2c] sm:$0xf]
  %v35 = vld [vmem:[%s0 + $0x30] sm:$0xf]
  %v36 = vld [vmem:[%s0 + $0x34] sm:$0xf]
  %v37 = vld [vmem:[%s0 + $0x38] sm:$0xf]
  %v38 = vld [vmem:[%s0 + $0x3c] sm:$0xf]
  %v39 = vld [vmem:[%s0 + $0x40] sm:$0xf]
  %v40 = vld [vmem:[%s0 + $0x44] sm:$0xf]
  %v41 = vld [vmem:[%s0 + $0x48] sm:$0xf]
  %v42 = vld [vmem:[%s0 + $0x4c] sm:$0xf]
  %v43 = vld [vmem:[%s0 + $0x50] sm:$0xf]
  %v44 = vld [vmem:[%s0 + $0x54] sm:$0xf]
  %v45 = vld [vmem:[%s0 + $0x58] sm:$0xf]
  %v46 = vld [vmem:[%s0 + $0x5c] sm:$0xf]
  %v47 = vld [vmem:[%s0 + $0x60] sm:$0xf]
  %v48 = vld [vmem:[%s0 + $0x64] sm:$0xf]
  %v49 = vld [vmem:[%s0 + $0x68] sm:$0xf]
  %v50 = vld [vmem:[%s0 + $0x6c] sm:$0xf]
  %v51 = vld [vmem:[%s0 + $0x70] sm:$0xf]
  %v52 = vld [vmem:[%s0 + $0x74] sm:$0xf]
  %v53 = vld [vmem:[%s0 + $0x78] sm:$0xf]
  %v54 = vld [vmem:[%s0 + $0x7c] sm:$0xf]
  %v55 = vld [vmem:[%s1] sm:$0x1]
  %v56 = vunpack.c.l.bf16 %v23
  %v57 = vunpack.c.l.bf16 %v24
  %v58 = vunpack.c.l.bf16 %v25
  %v59 = vunpack.c.l.bf16 %v26
  %v60 = vunpack.c.l.bf16 %v27
  %v61 = vunpack.c.l.bf16 %v28
  %v62 = vunpack.c.l.bf16 %v29
  %v63 = vunpack.c.l.bf16 %v30
  %v64 = vunpack.c.l.bf16 %v31
  %v65 = vunpack.c.l.bf16 %v32
  %v66 = vunpack.c.l.bf16 %v33
  %v67 = vunpack.c.l.bf16 %v34
  %v68 = vunpack.c.l.bf16 %v35
  %v69 = vunpack.c.l.bf16 %v36
  %v70 = vunpack.c.l.bf16 %v37
  %v71 = vunpack.c.l.bf16 %v38
  %v72 = vunpack.c.l.bf16 %v39
  %v73 = vunpack.c.l.bf16 %v40
  %v74 = vunpack.c.l.bf16 %v41
  %v75 = vunpack.c.l.bf16 %v42
  %v76 = vunpack.c.l.bf16 %v43
  %v77 = vunpack.c.l.bf16 %v44
  %v78 = vunpack.c.l.bf16 %v45
  %v79 = vunpack.c.l.bf16 %v46
  %v80 = vunpack.c.l.bf16 %v47
  %v81 = vunpack.c.l.bf16 %v48
  %v82 = vunpack.c.l.bf16 %v49
  %v83 = vunpack.c.l.bf16 %v50
  %v84 = vunpack.c.l.bf16 %v51
  %v85 = vunpack.c.l.bf16 %v52
  %v86 = vunpack.c.l.bf16 %v53
  %v87 = vunpack.c.l.bf16 %v54
  %v89 = vlaneseq
  %v90 = vshrl.u32 %v89, 7
  %v91 = vsub.s32 0, %v90
  %v92 = vrot.slane %v55, %v91
  %v94 = vmul.f32 %v56, %v92
  %v95 = vmul.f32 %v57, %v92
  %v96 = vmul.f32 %v58, %v92
  %v97 = vmul.f32 %v59, %v92
  %v98 = vmul.f32 %v60, %v92
  %v99 = vmul.f32 %v61, %v92
  %v100 = vmul.f32 %v62, %v92
  %v101 = vmul.f32 %v63, %v92
  %v102 = vmul.f32 %v64, %v92
  %v103 = vmul.f32 %v65, %v92
  %v104 = vmul.f32 %v66, %v92
  %v105 = vmul.f32 %v67, %v92
  %v106 = vmul.f32 %v68, %v92
  %v107 = vmul.f32 %v69, %v92
  %v108 = vmul.f32 %v70, %v92
  %v109 = vmul.f32 %v71, %v92
  %v110 = vmul.f32 %v72, %v92
  %v111 = vmul.f32 %v73, %v92
  %v112 = vmul.f32 %v74, %v92
  %v113 = vmul.f32 %v75, %v92
  %v114 = vmul.f32 %v76, %v92
  %v115 = vmul.f32 %v77, %v92
  %v116 = vmul.f32 %v78, %v92
  %v117 = vmul.f32 %v79, %v92
  %v118 = vmul.f32 %v80, %v92
  %v119 = vmul.f32 %v81, %v92
  %v120 = vmul.f32 %v82, %v92
  %v121 = vmul.f32 %v83, %v92
  %v122 = vmul.f32 %v84, %v92
  %v123 = vmul.f32 %v85, %v92
  %v124 = vmul.f32 %v86, %v92
  %v125 = vmul.f32 %v87, %v92
  %v126 = vld [vmem:[%s2] sm:$0x1]
  %v128 = vlaneseq
  %v129 = vshrl.u32 %v128, 7
  %v130 = vsub.s32 0, %v129
  %v131 = vrot.slane %v126, %v130
  %v133 = vadd.f32 %v94, %v131
  %v134 = vadd.f32 %v95, %v131
  %v135 = vadd.f32 %v96, %v131
  %v136 = vadd.f32 %v97, %v131
  %v137 = vadd.f32 %v98, %v131
  %v138 = vadd.f32 %v99, %v131
  %v139 = vadd.f32 %v100, %v131
  %v140 = vadd.f32 %v101, %v131
  %v141 = vadd.f32 %v102, %v131
  %v142 = vadd.f32 %v103, %v131
  %v143 = vadd.f32 %v104, %v131
  %v144 = vadd.f32 %v105, %v131
  %v145 = vadd.f32 %v106, %v131
  %v146 = vadd.f32 %v107, %v131
  %v147 = vadd.f32 %v108, %v131
  %v148 = vadd.f32 %v109, %v131
  %v149 = vadd.f32 %v110, %v131
  %v150 = vadd.f32 %v111, %v131
  %v151 = vadd.f32 %v112, %v131
  %v152 = vadd.f32 %v113, %v131
  %v153 = vadd.f32 %v114, %v131
  %v154 = vadd.f32 %v115, %v131
  %v155 = vadd.f32 %v116, %v131
  %v156 = vadd.f32 %v117, %v131
  %v157 = vadd.f32 %v118, %v131
  %v158 = vadd.f32 %v119, %v131
  %v159 = vadd.f32 %v120, %v131
  %v160 = vadd.f32 %v121, %v131
  %v161 = vadd.f32 %v122, %v131
  %v162 = vadd.f32 %v123, %v131
  %v163 = vadd.f32 %v124, %v131
  %v164 = vadd.f32 %v125, %v131
  %v165 = vld [vmem:[%s3] sm:$0xf]
  %v166 = vld [vmem:[%s3 + $0x4] sm:$0xf]
  %v167 = vld [vmem:[%s3 + $0x8] sm:$0xf]
  %v168 = vld [vmem:[%s3 + $0xc] sm:$0xf]
  %v169 = vld [vmem:[%s3 + $0x10] sm:$0xf]
  %v170 = vld [vmem:[%s3 + $0x14] sm:$0xf]
  %v171 = vld [vmem:[%s3 + $0x18] sm:$0xf]
  %v172 = vld [vmem:[%s3 + $0x1c] sm:$0xf]
  %v173 = vld [vmem:[%s3 + $0x20] sm:$0xf]
  %v174 = vld [vmem:[%s3 + $0x24] sm:$0xf]
  %v175 = vld [vmem:[%s3 + $0x28] sm:$0xf]
  %v176 = vld [vmem:[%s3 + $0x2c] sm:$0xf]
  %v177 = vld [vmem:[%s3 + $0x30] sm:$0xf]
  %v178 = vld [vmem:[%s3 + $0x34] sm:$0xf]
  %v179 = vld [vmem:[%s3 + $0x38] sm:$0xf]
  %v180 = vld [vmem:[%s3 + $0x3c] sm:$0xf]
  %v181 = vld [vmem:[%s3 + $0x40] sm:$0xf]
  %v182 = vld [vmem:[%s3 + $0x44] sm:$0xf]
  %v183 = vld [vmem:[%s3 + $0x48] sm:$0xf]
  %v184 = vld [vmem:[%s3 + $0x4c] sm:$0xf]
  %v185 = vld [vmem:[%s3 + $0x50] sm:$0xf]
  %v186 = vld [vmem:[%s3 + $0x54] sm:$0xf]
  %v187 = vld [vmem:[%s3 + $0x58] sm:$0xf]
  %v188 = vld [vmem:[%s3 + $0x5c] sm:$0xf]
  %v189 = vld [vmem:[%s3 + $0x60] sm:$0xf]
  %v190 = vld [vmem:[%s3 + $0x64] sm:$0xf]
  %v191 = vld [vmem:[%s3 + $0x68] sm:$0xf]
  %v192 = vld [vmem:[%s3 + $0x6c] sm:$0xf]
  %v193 = vld [vmem:[%s3 + $0x70] sm:$0xf]
  %v194 = vld [vmem:[%s3 + $0x74] sm:$0xf]
  %v195 = vld [vmem:[%s3 + $0x78] sm:$0xf]
  %v196 = vld [vmem:[%s3 + $0x7c] sm:$0xf]
  %v197 = vld [vmem:[%s4] sm:$0x1]
  %v198 = vunpack.c.l.bf16 %v165
  %v199 = vunpack.c.l.bf16 %v166
  %v200 = vunpack.c.l.bf16 %v167
  %v201 = vunpack.c.l.bf16 %v168
  %v202 = vunpack.c.l.bf16 %v169
  %v203 = vunpack.c.l.bf16 %v170
  %v204 = vunpack.c.l.bf16 %v171
  %v205 = vunpack.c.l.bf16 %v172
  %v206 = vunpack.c.l.bf16 %v173
  %v207 = vunpack.c.l.bf16 %v174
  %v208 = vunpack.c.l.bf16 %v175
  %v209 = vunpack.c.l.bf16 %v176
  %v210 = vunpack.c.l.bf16 %v177
  %v211 = vunpack.c.l.bf16 %v178
  %v212 = vunpack.c.l.bf16 %v179
  %v213 = vunpack.c.l.bf16 %v180
  %v214 = vunpack.c.l.bf16 %v181
  %v215 = vunpack.c.l.bf16 %v182
  %v216 = vunpack.c.l.bf16 %v183
  %v217 = vunpack.c.l.bf16 %v184
  %v218 = vunpack.c.l.bf16 %v185
  %v219 = vunpack.c.l.bf16 %v186
  %v220 = vunpack.c.l.bf16 %v187
  %v221 = vunpack.c.l.bf16 %v188
  %v222 = vunpack.c.l.bf16 %v189
  %v223 = vunpack.c.l.bf16 %v190
  %v224 = vunpack.c.l.bf16 %v191
  %v225 = vunpack.c.l.bf16 %v192
  %v226 = vunpack.c.l.bf16 %v193
  %v227 = vunpack.c.l.bf16 %v194
  %v228 = vunpack.c.l.bf16 %v195
  %v229 = vunpack.c.l.bf16 %v196
  %v231 = vlaneseq
  %v232 = vshrl.u32 %v231, 7
  %v233 = vsub.s32 0, %v232
  %v234 = vrot.slane %v197, %v233
  %v236 = vmul.f32 %v198, %v234
  %v237 = vmul.f32 %v199, %v234
  %v238 = vmul.f32 %v200, %v234
  %v239 = vmul.f32 %v201, %v234
  %v240 = vmul.f32 %v202, %v234
  %v241 = vmul.f32 %v203, %v234
  %v242 = vmul.f32 %v204, %v234
  %v243 = vmul.f32 %v205, %v234
  %v244 = vmul.f32 %v206, %v234
  %v245 = vmul.f32 %v207, %v234
  %v246 = vmul.f32 %v208, %v234
  %v247 = vmul.f32 %v209, %v234
  %v248 = vmul.f32 %v210, %v234
  %v249 = vmul.f32 %v211, %v234
  %v250 = vmul.f32 %v212, %v234
  %v251 = vmul.f32 %v213, %v234
  %v252 = vmul.f32 %v214, %v234
  %v253 = vmul.f32 %v215, %v234
  %v254 = vmul.f32 %v216, %v234
  %v255 = vmul.f32 %v217, %v234
  %v256 = vmul.f32 %v218, %v234
  %v257 = vmul.f32 %v219, %v234
  %v258 = vmul.f32 %v220, %v234
  %v259 = vmul.f32 %v221, %v234
  %v260 = vmul.f32 %v222, %v234
  %v261 = vmul.f32 %v223, %v234
  %v262 = vmul.f32 %v224, %v234
  %v263 = vmul.f32 %v225, %v234
  %v264 = vmul.f32 %v226, %v234
  %v265 = vmul.f32 %v227, %v234
  %v266 = vmul.f32 %v228, %v234
  %v267 = vmul.f32 %v229, %v234
  %v268 = vadd.f32 %v133, %v236
  %v269 = vadd.f32 %v134, %v237
  %v270 = vadd.f32 %v135, %v238
  %v271 = vadd.f32 %v136, %v239
  %v272 = vadd.f32 %v137, %v240
  %v273 = vadd.f32 %v138, %v241
  %v274 = vadd.f32 %v139, %v242
  %v275 = vadd.f32 %v140, %v243
  %v276 = vadd.f32 %v141, %v244
  %v277 = vadd.f32 %v142, %v245
  %v278 = vadd.f32 %v143, %v246
  %v279 = vadd.f32 %v144, %v247
  %v280 = vadd.f32 %v145, %v248
  %v281 = vadd.f32 %v146, %v249
  %v282 = vadd.f32 %v147, %v250
  %v283 = vadd.f32 %v148, %v251
  %v284 = vadd.f32 %v149, %v252
  %v285 = vadd.f32 %v150, %v253
  %v286 = vadd.f32 %v151, %v254
  %v287 = vadd.f32 %v152, %v255
  %v288 = vadd.f32 %v153, %v256
  %v289 = vadd.f32 %v154, %v257
  %v290 = vadd.f32 %v155, %v258
  %v291 = vadd.f32 %v156, %v259
  %v292 = vadd.f32 %v157, %v260
  %v293 = vadd.f32 %v158, %v261
  %v294 = vadd.f32 %v159, %v262
  %v295 = vadd.f32 %v160, %v263
  %v296 = vadd.f32 %v161, %v264
  %v297 = vadd.f32 %v162, %v265
  %v298 = vadd.f32 %v163, %v266
  %v299 = vadd.f32 %v164, %v267
  %v300 = vld [vmem:[%s5] sm:$0x1]
  %v302 = vlaneseq
  %v303 = vshrl.u32 %v302, 7
  %v304 = vsub.s32 0, %v303
  %v305 = vrot.slane %v300, %v304
  %v307 = vadd.f32 %v268, %v305
  %v308 = vadd.f32 %v269, %v305
  %v309 = vadd.f32 %v270, %v305
  %v310 = vadd.f32 %v271, %v305
  %v311 = vadd.f32 %v272, %v305
  %v312 = vadd.f32 %v273, %v305
  %v313 = vadd.f32 %v274, %v305
  %v314 = vadd.f32 %v275, %v305
  %v315 = vadd.f32 %v276, %v305
  %v316 = vadd.f32 %v277, %v305
  %v317 = vadd.f32 %v278, %v305
  %v318 = vadd.f32 %v279, %v305
  %v319 = vadd.f32 %v280, %v305
  %v320 = vadd.f32 %v281, %v305
  %v321 = vadd.f32 %v282, %v305
  %v322 = vadd.f32 %v283, %v305
  %v323 = vadd.f32 %v284, %v305
  %v324 = vadd.f32 %v285, %v305
  %v325 = vadd.f32 %v286, %v305
  %v326 = vadd.f32 %v287, %v305
  %v327 = vadd.f32 %v288, %v305
  %v328 = vadd.f32 %v289, %v305
  %v329 = vadd.f32 %v290, %v305
  %v330 = vadd.f32 %v291, %v305
  %v331 = vadd.f32 %v292, %v305
  %v332 = vadd.f32 %v293, %v305
  %v333 = vadd.f32 %v294, %v305
  %v334 = vadd.f32 %v295, %v305
  %v335 = vadd.f32 %v296, %v305
  %v336 = vadd.f32 %v297, %v305
  %v337 = vadd.f32 %v298, %v305
  %v338 = vadd.f32 %v299, %v305
  %v339 = vmax.f32 %v307, 0.0
  %v340 = vmax.f32 %v308, 0.0
  %v341 = vmax.f32 %v309, 0.0
  %v342 = vmax.f32 %v310, 0.0
  %v343 = vmax.f32 %v311, 0.0
  %v344 = vmax.f32 %v312, 0.0
  %v345 = vmax.f32 %v313, 0.0
  %v346 = vmax.f32 %v314, 0.0
  %v347 = vmax.f32 %v315, 0.0
  %v348 = vmax.f32 %v316, 0.0
  %v349 = vmax.f32 %v317, 0.0
  %v350 = vmax.f32 %v318, 0.0
  %v351 = vmax.f32 %v319, 0.0
  %v352 = vmax.f32 %v320, 0.0
  %v353 = vmax.f32 %v321, 0.0
  %v354 = vmax.f32 %v322, 0.0
  %v355 = vmax.f32 %v323, 0.0
  %v356 = vmax.f32 %v324, 0.0
  %v357 = vmax.f32 %v325, 0.0
  %v358 = vmax.f32 %v326, 0.0
  %v359 = vmax.f32 %v327, 0.0
  %v360 = vmax.f32 %v328, 0.0
  %v361 = vmax.f32 %v329, 0.0
  %v362 = vmax.f32 %v330, 0.0
  %v363 = vmax.f32 %v331, 0.0
  %v364 = vmax.f32 %v332, 0.0
  %v365 = vmax.f32 %v333, 0.0
  %v366 = vmax.f32 %v334, 0.0
  %v367 = vmax.f32 %v335, 0.0
  %v368 = vmax.f32 %v336, 0.0
  %v369 = vmax.f32 %v337, 0.0
  %v370 = vmax.f32 %v338, 0.0
  %371 = vst [vmem:[%s6] sm:$0xff] %v339
  %372 = vst [vmem:[%s6 + $0x8] sm:$0xff] %v340
  %373 = vst [vmem:[%s6 + $0x10] sm:$0xff] %v341
  %374 = vst [vmem:[%s6 + $0x18] sm:$0xff] %v342
  %375 = vst [vmem:[%s6 + $0x20] sm:$0xff] %v343
  %376 = vst [vmem:[%s6 + $0x28] sm:$0xff] %v344
  %377 = vst [vmem:[%s6 + $0x30] sm:$0xff] %v345
  %378 = vst [vmem:[%s6 + $0x38] sm:$0xff] %v346
  %379 = vst [vmem:[%s6 + $0x40] sm:$0xff] %v347
  %380 = vst [vmem:[%s6 + $0x48] sm:$0xff] %v348
  %381 = vst [vmem:[%s6 + $0x50] sm:$0xff] %v349
  %382 = vst [vmem:[%s6 + $0x58] sm:$0xff] %v350
  %383 = vst [vmem:[%s6 + $0x60] sm:$0xff] %v351
  %384 = vst [vmem:[%s6 + $0x68] sm:$0xff] %v352
  %385 = vst [vmem:[%s6 + $0x70] sm:$0xff] %v353
  %386 = vst [vmem:[%s6 + $0x78] sm:$0xff] %v354
  %387 = vst [vmem:[%s6 + $0x80] sm:$0xff] %v355
  %388 = vst [vmem:[%s6 + $0x88] sm:$0xff] %v356
  %389 = vst [vmem:[%s6 + $0x90] sm:$0xff] %v357
  %390 = vst [vmem:[%s6 + $0x98] sm:$0xff] %v358
  %391 = vst [vmem:[%s6 + $0xa0] sm:$0xff] %v359
  %392 = vst [vmem:[%s6 + $0xa8] sm:$0xff] %v360
  %393 = vst [vmem:[%s6 + $0xb0] sm:$0xff] %v361
  %394 = vst [vmem:[%s6 + $0xb8] sm:$0xff] %v362
  %395 = vst [vmem:[%s6 + $0xc0] sm:$0xff] %v363
  %396 = vst [vmem:[%s6 + $0xc8] sm:$0xff] %v364
  %397 = vst [vmem:[%s6 + $0xd0] sm:$0xff] %v365
  %398 = vst [vmem:[%s6 + $0xd8] sm:$0xff] %v366
  %399 = vst [vmem:[%s6 + $0xe0] sm:$0xff] %v367
  %400 = vst [vmem:[%s6 + $0xe8] sm:$0xff] %v368
  %401 = vst [vmem:[%s6 + $0xf0] sm:$0xff] %v369
  %402 = vst [vmem:[%s6 + $0xf8] sm:$0xff] %v370
  // Predicated region
  $region26: #{basic_block_forward.9} parent=0 // pred_check
    _
  $region27: #{basic_block_forward.9} parent=0 // pred_check_branch
    %404 = sbr.rel (0) target = $region29
  $region28: #{basic_block_forward.9} parent=0 // pred_region
    _
  $region29: #{basic_block_forward.9} parent=0 // pred_fallthru
    _
  // Predicated region
  $region30: #{basic_block_forward.9} parent=0 // pred_check
    _
  $region31: #{basic_block_forward.9} parent=0 // pred_check_branch
    %406 = sbr.rel (0) target = $region33
  $region32: #{basic_block_forward.9} parent=0 // pred_region
    _
  $region33: #{basic_block_forward.9} parent=0 // pred_fallthru
    _

</llo_original>
